<compile_context>
chip_gen: v7x
topology: tpu7x:2x2x1
jax: 0.10.0
libtpu: 0.0.40
codegen_flags: <defaults>
</compile_context>

<pallas_src>
import math

import jax
import jax.numpy as jnp
from jax.experimental import pallas as pl
from jax.experimental.pallas import tpu as pltpu

EPS = 1e-5  # PyTorch BatchNorm1d default


def _make_kernel(epi_dtype):
    """Fused MLP forward for one batch tile; epilogue runs in `epi_dtype`."""

    def kernel(x_ref,
               w1_ref, b1_ref,
               w2_ref, b2_ref,
               w3_ref, b3_ref,
               w4_ref, b4_ref,
               o_ref):
        # x streams in f32; cast to bf16 on-chip (cheap VPU op, hidden by MXU).
        h = x_ref[...].astype(jnp.bfloat16)

        def block(h, w_ref, b_ref):
            # Linear (MXU, f32 accumulate) -> bias add + ReLU epilogue.
            acc = jnp.dot(h, w_ref[...], preferred_element_type=jnp.float32)
            act = jnp.maximum(acc.astype(epi_dtype) + b_ref[...].astype(epi_dtype), 0)
            return act.astype(jnp.bfloat16)

        h = block(h, w1_ref, b1_ref)  # Linear(D,256)+ReLU         (Dropout = id)
        h = block(h, w2_ref, b2_ref)  # [BN256 folded] Linear(256,128)+ReLU (Dropout = id)
        h = block(h, w3_ref, b3_ref)  # [BN128 folded] Linear(128,64)+ReLU

        # [BN64 folded] Linear(64,1) head: contract the 64 features of the
        # sublane-padded (8,64) head weight against h (block_n,64) on the MXU
        # (transposed-RHS weight load) -> lane-dense (8, block_n); row 0 is
        # the real output row.  Keeps the store fully lane-dense.
        o = jax.lax.dot_general(
            w4_ref[...], h,
            dimension_numbers=(((1,), (1,)), ((), ())),
            preferred_element_type=jnp.float32)              # (8, block_n)
        o_ref[...] = o[0:1, :] + b4_ref[0, 0]                # scalar bias from SMEM

    return kernel


def init_params(key, input_dim):
    """Deterministic PyTorch-style init (uniform +/- 1/sqrt(fan_in)).

    Returns the raw (unfolded) parameter list:
      [W1,b1, g1,bt1,rm1,rv1, W2,b2, g2,bt2,rm2,rv2, W3,b3, g3,bt3,rm3,rv3, W4,b4]
    with W stored as (in_features, out_features).
    """
    layer_dims = [(input_dim, 256), (256, 128), (128, 64), (64, 1)]
    params = []
    for fin, fout in layer_dims:
        key, kw, kb = jax.random.split(key, 3)
        bound = 1.0 / math.sqrt(fin)
        w = jax.random.uniform(kw, (fin, fout), jnp.float32, -bound, bound)
        b = jax.random.uniform(kb, (1, fout), jnp.float32, -bound, bound)
        params += [w, b]
        if fout != 1:  # BatchNorm1d follows the first three Linear+ReLU blocks
            gamma = jnp.ones((1, fout), jnp.float32)
            beta = jnp.zeros((1, fout), jnp.float32)
            rmean = jnp.zeros((1, fout), jnp.float32)
            rvar = jnp.ones((1, fout), jnp.float32)
            params += [gamma, beta, rmean, rvar]
    return params


def fold_eval_params(params):
    """Fold eval-mode BN (running stats) into the next Linear; cast W to bf16.

    BN(h) = h*s + t with s = g*rsqrt(rv+eps), t = bt - rm*s, so
    BN(h) @ W + b == h @ (s[:,None]*W) + (b + t @ W) exactly (in f32).
    """
    (w1, b1, g1, bt1, rm1, rv1,
     w2, b2, g2, bt2, rm2, rv2,
     w3, b3, g3, bt3, rm3, rv3,
     w4, b4) = params

    def fold(w_next, b_next, g, bt, rm, rv):
        s = g * jax.lax.rsqrt(rv + EPS)          # (1, C)
        t = bt - rm * s                          # (1, C)
        return s.reshape(-1, 1) * w_next, b_next + t @ w_next

    w2f, b2f = fold(w2, b2, g1, bt1, rm1, rv1)
    w3f, b3f = fold(w3, b3, g2, bt2, rm2, rv2)
    w4f, b4f = fold(w4, b4, g3, bt3, rm3, rv3)

    # Head weight as an 8-sublane (8, 64) block; row 0 carries w4^T, rows 1..7
    # are zero (the kernel keeps only row 0 of the MXU result).
    w4_rows = jnp.zeros((8, w4f.shape[0]), jnp.float32).at[0, :].set(w4f[:, 0])

    # bf16 weights (MXU inputs), f32 biases; b4 as a (1,1) SMEM scalar.
    return (w1.astype(jnp.bfloat16), b1,
            w2f.astype(jnp.bfloat16), b2f,
            w3f.astype(jnp.bfloat16), b3f,
            w4_rows.astype(jnp.bfloat16), b4f.reshape(1, 1))


def _round_up(a, b):
    return pl.cdiv(a, b) * b


def _choose_block_n(n, *, max_block_n=4096, target_tiles=8):
    """Batch tile: scale with N (~target_tiles grid steps), 256 <= bn <= cap,
    multiple of 128 so input sublanes and the lane-dense output stay aligned."""
    bn = _round_up(max(pl.cdiv(max(n, 1), target_tiles), 1), 128)
    bn = max(bn, 256)
    return min(bn, max_block_n)


def _default_bf16_epilogue():
    """bf16 bias/ReLU epilogue only where the VPU has a bf16 path (v6e/v7x)."""
    try:
        kind = jax.devices()[0].device_kind.lower()
    except Exception:
        return True
    return not any(t in kind for t in ("v2", "v3", "v4", "v5"))


def ddg_predict(x, params, *, max_block_n=4096, bf16_epilogue=None):
    """Eval-mode forward of DdGPredictor (params = raw list from init_params)."""
    N, D = x.shape
    if bf16_epilogue is None:
        bf16_epilogue = _default_bf16_epilogue()
    epi_dtype = jnp.bfloat16 if bf16_epilogue else jnp.float32

    w1, b1, w2, b2, w3, b3, w4p, b4 = fold_eval_params(params)

    block_n = _choose_block_n(N, max_block_n=max_block_n)
    num_tiles = pl.cdiv(N, block_n)      # ragged last tile handled by Pallas

    def const_spec(p):
        return pl.BlockSpec(p.shape, lambda i: (0, 0))

    in_specs = [pl.BlockSpec((block_n, D), lambda i: (i, 0))]   # x tile (f32)
    in_specs += [const_spec(w1), const_spec(b1),
                 const_spec(w2), const_spec(b2),
                 const_spec(w3), const_spec(b3),
                 const_spec(w4p),
                 pl.BlockSpec(memory_space=pltpu.MemorySpace.SMEM)]  # b4 scalar

    # Lane-dense output: one (1, block_n) row per grid step.
    out_specs = pl.BlockSpec((1, block_n), lambda i: (0, i))

    out = pl.pallas_call(
        _make_kernel(epi_dtype),
        out_shape=jax.ShapeDtypeStruct((1, num_tiles * block_n), jnp.float32),
        grid_spec=pl.GridSpec(
            grid=(num_tiles,),
            in_specs=in_specs,
            out_specs=out_specs,
        ),
        compiler_params=pltpu.CompilerParams(
            dimension_semantics=("parallel",),   # shard batch tiles across TCs
            vmem_limit_bytes=48 * 1024 * 1024,   # v7x-safe (<64 MiB physical)
        ),
    )(x, w1, b1, w2, b2, w3, b3, w4p, b4)

    return out[0, :N].reshape(N, 1)


def ddg_predict_ref(x, params):
    """Pure-JAX f32 reference of the original (unfolded) eval-mode math."""
    (w1, b1, g1, bt1, rm1, rv1,
     w2, b2, g2, bt2, rm2, rv2,
     w3, b3, g3, bt3, rm3, rv3,
     w4, b4) = params

    def bn(h, g, bt, rm, rv):
        return (h - rm) / jnp.sqrt(rv + EPS) * g + bt

    h = jnp.maximum(x @ w1 + b1, 0.0)
    h = bn(h, g1, bt1, rm1, rv1)
    h = jnp.maximum(h @ w2 + b2, 0.0)
    h = bn(h, g2, bt2, rm2, rv2)
    h = jnp.maximum(h @ w3 + b3, 0.0)
    h = bn(h, g3, bt3, rm3, rv3)
    return h @ w4 + b4


if __name__ == "__main__":
    input_dim = 32
    batch = 1000   # -> block_n=256, 4 grid steps, ragged last tile exercised

    root = jax.random.PRNGKey(0)
    kx, kp = jax.random.split(root)
    x = jax.random.normal(kx, (batch, input_dim), jnp.float32)
    params = init_params(kp, input_dim)

    out = jax.block_until_ready(ddg_predict(x, params))
    ref = ddg_predict_ref(x, params)

    assert out.shape == (batch, 1)
    max_err = float(jnp.max(jnp.abs(out - ref)))
    assert jnp.allclose(out, ref, atol=3e-2, rtol=3e-2), max_err

    print("KERNEL_OK")
</pallas_src>

<mosaic_0001>
module attributes {stable_mosaic.version = 11 : i64} {
  func.func @kernel(%arg0: i32, %arg1: memref<256x32xf32, #tpu.memory_space<vmem>>, %arg2: memref<32x256xbf16, #tpu.memory_space<vmem>>, %arg3: memref<1x256xf32, #tpu.memory_space<vmem>>, %arg4: memref<256x128xbf16, #tpu.memory_space<vmem>>, %arg5: memref<1x128xf32, #tpu.memory_space<vmem>>, %arg6: memref<128x64xbf16, #tpu.memory_space<vmem>>, %arg7: memref<1x64xf32, #tpu.memory_space<vmem>>, %arg8: memref<8x64xbf16, #tpu.memory_space<vmem>>, %arg9: memref<1x1xf32, #tpu.memory_space<smem>>, %arg10: memref<1x256xf32, #tpu.memory_space<vmem>>) attributes {dimension_semantics = [#tpu.dimension_semantics<parallel>], iteration_bounds = array<i64: 4>, scalar_prefetch = 0 : i64, scratch_operands = 0 : i64, tpu.core_type = #tpu.core_type<tc>, window_params = [{transform_indices = @transform_0, window_bounds = array<i64: 256, 32>}, {pipeline_mode = #tpu.pipeline_mode<synchronous>, transform_indices = @transform_1, window_bounds = array<i64: 32, 256>}, {pipeline_mode = #tpu.pipeline_mode<synchronous>, transform_indices = @transform_2, window_bounds = array<i64: 1, 256>}, {pipeline_mode = #tpu.pipeline_mode<synchronous>, transform_indices = @transform_3, window_bounds = array<i64: 256, 128>}, {pipeline_mode = #tpu.pipeline_mode<synchronous>, transform_indices = @transform_4, window_bounds = array<i64: 1, 128>}, {pipeline_mode = #tpu.pipeline_mode<synchronous>, transform_indices = @transform_5, window_bounds = array<i64: 128, 64>}, {pipeline_mode = #tpu.pipeline_mode<synchronous>, transform_indices = @transform_6, window_bounds = array<i64: 1, 64>}, {pipeline_mode = #tpu.pipeline_mode<synchronous>, transform_indices = @transform_7, window_bounds = array<i64: 8, 64>}, {transform_indices = @transform_8, window_bounds = array<i64: 1, 1>}, {transform_indices = @transform_9, window_bounds = array<i64: 1, 256>}]} {
    %c0 = arith.constant 0 : index
    %c0_0 = arith.constant 0 : index
    %0 = vector.load %arg1[%c0, %c0_0] : memref<256x32xf32, #tpu.memory_space<vmem>>, vector<256x32xf32>
    %1 = arith.truncf %0 : vector<256x32xf32> to vector<256x32xbf16>
    %c0_1 = arith.constant 0 : index
    %c0_2 = arith.constant 0 : index
    %2 = vector.load %arg2[%c0_1, %c0_2] : memref<32x256xbf16, #tpu.memory_space<vmem>>, vector<32x256xbf16>
    %cst = arith.constant dense<0.000000e+00> : vector<256x256xf32>
    %3 = tpu.matmul %1, %2, %cst {dimension_numbers = #tpu.dot_dimension_numbers<[1], [0], [0], [1], [0, 0, 1, 1], [], []>} : vector<256x32xbf16>, vector<32x256xbf16>, vector<256x256xf32> -> vector<256x256xf32>
    %4 = arith.truncf %3 : vector<256x256xf32> to vector<256x256xbf16>
    %c0_3 = arith.constant 0 : index
    %c0_4 = arith.constant 0 : index
    %5 = vector.load %arg3[%c0_3, %c0_4] : memref<1x256xf32, #tpu.memory_space<vmem>>, vector<1x256xf32>
    %6 = arith.truncf %5 : vector<1x256xf32> to vector<1x256xbf16>
    %7 = vector.broadcast %6 : vector<1x256xbf16> to vector<256x256xbf16>
    %8 = arith.addf %4, %7 : vector<256x256xbf16>
    %cst_5 = arith.constant 0.000000e+00 : bf16
    %9 = vector.broadcast %cst_5 : bf16 to vector<256x256xbf16>
    %10 = arith.maximumf %8, %9 : vector<256x256xbf16>
    %c0_6 = arith.constant 0 : index
    %c0_7 = arith.constant 0 : index
    %11 = vector.load %arg4[%c0_6, %c0_7] : memref<256x128xbf16, #tpu.memory_space<vmem>>, vector<256x128xbf16>
    %cst_8 = arith.constant dense<0.000000e+00> : vector<256x128xf32>
    %12 = tpu.matmul %10, %11, %cst_8 {dimension_numbers = #tpu.dot_dimension_numbers<[1], [0], [0], [1], [0, 0, 1, 1], [], []>} : vector<256x256xbf16>, vector<256x128xbf16>, vector<256x128xf32> -> vector<256x128xf32>
    %13 = arith.truncf %12 : vector<256x128xf32> to vector<256x128xbf16>
    %c0_9 = arith.constant 0 : index
    %c0_10 = arith.constant 0 : index
    %14 = vector.load %arg5[%c0_9, %c0_10] : memref<1x128xf32, #tpu.memory_space<vmem>>, vector<1x128xf32>
    %15 = arith.truncf %14 : vector<1x128xf32> to vector<1x128xbf16>
    %16 = vector.broadcast %15 : vector<1x128xbf16> to vector<256x128xbf16>
    %17 = arith.addf %13, %16 : vector<256x128xbf16>
    %cst_11 = arith.constant 0.000000e+00 : bf16
    %18 = vector.broadcast %cst_11 : bf16 to vector<256x128xbf16>
    %19 = arith.maximumf %17, %18 : vector<256x128xbf16>
    %c0_12 = arith.constant 0 : index
    %c0_13 = arith.constant 0 : index
    %20 = vector.load %arg6[%c0_12, %c0_13] : memref<128x64xbf16, #tpu.memory_space<vmem>>, vector<128x64xbf16>
    %cst_14 = arith.constant dense<0.000000e+00> : vector<256x64xf32>
    %21 = tpu.matmul %19, %20, %cst_14 {dimension_numbers = #tpu.dot_dimension_numbers<[1], [0], [0], [1], [0, 0, 1, 1], [], []>} : vector<256x128xbf16>, vector<128x64xbf16>, vector<256x64xf32> -> vector<256x64xf32>
    %22 = arith.truncf %21 : vector<256x64xf32> to vector<256x64xbf16>
    %c0_15 = arith.constant 0 : index
    %c0_16 = arith.constant 0 : index
    %23 = vector.load %arg7[%c0_15, %c0_16] : memref<1x64xf32, #tpu.memory_space<vmem>>, vector<1x64xf32>
    %24 = arith.truncf %23 : vector<1x64xf32> to vector<1x64xbf16>
    %25 = vector.broadcast %24 : vector<1x64xbf16> to vector<256x64xbf16>
    %26 = arith.addf %22, %25 : vector<256x64xbf16>
    %cst_17 = arith.constant 0.000000e+00 : bf16
    %27 = vector.broadcast %cst_17 : bf16 to vector<256x64xbf16>
    %28 = arith.maximumf %26, %27 : vector<256x64xbf16>
    %c0_18 = arith.constant 0 : index
    %c0_19 = arith.constant 0 : index
    %29 = vector.load %arg8[%c0_18, %c0_19] : memref<8x64xbf16, #tpu.memory_space<vmem>>, vector<8x64xbf16>
    %cst_20 = arith.constant dense<0.000000e+00> : vector<8x256xf32>
    %30 = tpu.matmul %29, %28, %cst_20 {dimension_numbers = #tpu.dot_dimension_numbers<[1], [1], [0], [0], [0, 0, 1, 0], [], []>} : vector<8x64xbf16>, vector<256x64xbf16>, vector<8x256xf32> -> vector<8x256xf32>
    %31 = vector.extract_strided_slice %30 {offsets = [0, 0], sizes = [1, 256], strides = [1, 1]} : vector<8x256xf32> to vector<1x256xf32>
    %c0_21 = arith.constant 0 : index
    %c0_22 = arith.constant 0 : index
    %32 = memref.load %arg9[%c0_21, %c0_22] : memref<1x1xf32, #tpu.memory_space<smem>>
    %33 = vector.broadcast %32 : f32 to vector<1x256xf32>
    %34 = arith.addf %31, %33 : vector<1x256xf32>
    %c0_23 = arith.constant 0 : index
    %c0_24 = arith.constant 0 : index
    %35 = vector.load %arg10[%c0_23, %c0_24] : memref<1x256xf32, #tpu.memory_space<vmem>>, vector<1x256xf32>
    tpu.vector_store %arg10[%c0_23, %c0_24], %34 {strides = array<i32>} : memref<1x256xf32, #tpu.memory_space<vmem>>, vector<1x256xf32>,
    return
  }
  func.func @transform_0(%arg0: i32) -> (i32, i32) {
    %c0_i32 = arith.constant 0 : i32
    %c0_i32_0 = arith.constant 0 : i32
    return %arg0, %c0_i32 : i32, i32
  }
  func.func @transform_1(%arg0: i32) -> (i32, i32) {
    %c0_i32 = arith.constant 0 : i32
    %c0_i32_0 = arith.constant 0 : i32
    %c0_i32_1 = arith.constant 0 : i32
    return %c0_i32, %c0_i32_0 : i32, i32
  }
  func.func @transform_2(%arg0: i32) -> (i32, i32) {
    %c0_i32 = arith.constant 0 : i32
    %c0_i32_0 = arith.constant 0 : i32
    %c0_i32_1 = arith.constant 0 : i32
    return %c0_i32, %c0_i32_0 : i32, i32
  }
  func.func @transform_3(%arg0: i32) -> (i32, i32) {
    %c0_i32 = arith.constant 0 : i32
    %c0_i32_0 = arith.constant 0 : i32
    %c0_i32_1 = arith.constant 0 : i32
    return %c0_i32, %c0_i32_0 : i32, i32
  }
  func.func @transform_4(%arg0: i32) -> (i32, i32) {
    %c0_i32 = arith.constant 0 : i32
    %c0_i32_0 = arith.constant 0 : i32
    %c0_i32_1 = arith.constant 0 : i32
    return %c0_i32, %c0_i32_0 : i32, i32
  }
  func.func @transform_5(%arg0: i32) -> (i32, i32) {
    %c0_i32 = arith.constant 0 : i32
    %c0_i32_0 = arith.constant 0 : i32
    %c0_i32_1 = arith.constant 0 : i32
    return %c0_i32, %c0_i32_0 : i32, i32
  }
  func.func @transform_6(%arg0: i32) -> (i32, i32) {
    %c0_i32 = arith.constant 0 : i32
    %c0_i32_0 = arith.constant 0 : i32
    %c0_i32_1 = arith.constant 0 : i32
    return %c0_i32, %c0_i32_0 : i32, i32
  }
  func.func @transform_7(%arg0: i32) -> (i32, i32) {
    %c0_i32 = arith.constant 0 : i32
    %c0_i32_0 = arith.constant 0 : i32
    %c0_i32_1 = arith.constant 0 : i32
    return %c0_i32, %c0_i32_0 : i32, i32
  }
  func.func @transform_8(%arg0: i32) -> (i32, i32) {
    %c0_i32 = arith.constant 0 : i32
    %c0_i32_0 = arith.constant 0 : i32
    %c0_i32_1 = arith.constant 0 : i32
    return %c0_i32, %c0_i32_0 : i32, i32
  }
  func.func @transform_9(%arg0: i32) -> (i32, i32) {
    %c0_i32 = arith.constant 0 : i32
    %c0_i32_0 = arith.constant 0 : i32
    return %c0_i32, %arg0 : i32, i32
  }
}

</mosaic_0001>

<llo_original>
// kernel: tpu_custom_call.1
$region0: #{tpu_custom_call.1}
  #allocation0 [shape = 'u32[]', space=smem, size = 0x4, offset = 0x4, fixed_abs, tag = 'smem constant byte address 0x4 - core index']
  #allocation1 [shape = 'u32[144,128]{1,0:T(1,128)}', space=vmem, size = 0x12000, scoped, tag = 'internal scratch']
  #allocation2 [shape = 'f32[1,1]{1,0:T(1,128)S(6)}', space=smem, size = 0x200, scoped, tag = 'scoped memory for tpu_custom_call.1']
  %s0 = inlined_call_operand.vmem [shape: f32[1000,32], index: 0, kind: input, shape index: {}]
  %s1 = inlined_call_operand.vmem [shape: bf16[32,256], index: 1, kind: input, shape index: {}]
  %s2 = inlined_call_operand.vmem [shape: f32[1,256], index: 2, kind: input, shape index: {}]
  %s3 = inlined_call_operand.vmem [shape: bf16[256,128], index: 3, kind: input, shape index: {}]
  %s4 = inlined_call_operand.vmem [shape: f32[1,128], index: 4, kind: input, shape index: {}]
  %s5 = inlined_call_operand.vmem [shape: bf16[128,64], index: 5, kind: input, shape index: {}]
  %s6 = inlined_call_operand.vmem [shape: f32[1,64], index: 6, kind: input, shape index: {}]
  %s7 = inlined_call_operand.vmem [shape: bf16[8,64], index: 7, kind: input, shape index: {}]
  %s8 = inlined_call_operand.<no memory space> [shape: f32[1,1], index: 8, kind: input, shape index: {}]
  %s9 = inlined_call_operand.hbm [shape: f32[1,1024], index: 9, kind: output, shape index: {}]
  %s10 = sld [smem:[#allocation0]]
  $region69: #{tpu_custom_call.1} parent=0
    _
  %s12 = ssub.s32 1, %s10
  %s13 = scalar_select 0, %s12, %s10
  %14 = sst [smem:[#allocation2]] %s8
  $region1: #{tpu_custom_call.1} parent=0
    #allocation3 [shape = 'u8[2048]{0}', space=vmem, size = 0x800, scoped, tag = 'output window, operand 0']
    #allocation4 [shape = 's32[2]{0}', space=sflag, size = 0x8, scoped, tag = 'scoped memory for tpu_custom_call.1']
    %15 = vsyncpa [#allocation4], 0
    %s16 = scalar_lea.sflag [#allocation4], 1
    %17 = vsyncpa %s16, 0
    loop: start=0, step=1, limit=6
    $region2: #{tpu_custom_call.1} parent=1 // loop_pre_header
      _
    $region3: #{tpu_custom_call.1} parent=1 // loop_header
      %s19 = sphi 0, %s23
      %p20 = scmp.ge.s32.totalorder %s19, 6
      %s29 = sphi 0, %s31
      %s32 = sphi 0, %s29
      %s33 = sphi 0, %s32
      %s49 = sphi 0, %s33
      %s53 = sphi 0, %s53
      %s55 = sphi 0, %s53
      %s56 = sphi 0, %s55
      %s70 = sphi 0, %s56
      %s74 = sphi 0, %s74
      %s76 = sphi 0, %s74
      %s77 = sphi 0, %s76
      %s91 = sphi 0, %s77
      %s95 = sphi 0, %s95
      %s97 = sphi 0, %s95
      %s98 = sphi 0, %s97
      %s112 = sphi 0, %s98
      %s116 = sphi 0, %s116
      %s118 = sphi 0, %s116
      %s119 = sphi 0, %s118
      %s133 = sphi 0, %s119
      %s137 = sphi 0, %s137
      %s139 = sphi 0, %s137
      %s140 = sphi 0, %s139
      %s154 = sphi 0, %s140
      %s158 = sphi 0, %s158
      %s160 = sphi 0, %s158
      %s161 = sphi 0, %s160
      %s175 = sphi 0, %s161
      %s179 = sphi 0, %s179
      %s181 = sphi 0, %s179
      %s182 = sphi 0, %s181
      %s196 = sphi 0, %s182
      %s200 = sphi 0, %s200
      %s202 = sphi 0, %s200
      %s203 = sphi 0, %s202
      %s217 = sphi 0, %s203
      %s223 = sphi 0, %s225
      %s226 = sphi 0, %s223
      %s227 = sphi 0, %s226
      %s243 = sphi 0, %s227
    $region4: #{tpu_custom_call.1} parent=1 // loop_header_branch
      %22 = sbr.rel (%p20) target = $region8
    $region5: #{tpu_custom_call.1} parent=1 // loop_body
      %s24 = ssub.s32 %s19, 1
      %s25 = ssub.s32 %s19, 2
      %s26 = sadd.s32 %s19, 1
      %s27 = ssub.s32 %s19, %s26
      %p28 = scmp.eq.s32.totalorder %s27, 0
      %s30 = sadd.s32 %s29, 1
      %s31 = scalar_select %p28, %s29, %s30
      %p34 = pneg %p28
      %p35 = scmp.eq.s32.totalorder %s19, 3
      %p36 = por %p34, %p35
      %p37 = scmp.ne.s32.totalorder %s29, %s32
      %p38 = scmp.eq.s32.totalorder %s19, 0
      %p39 = por %p37, %p38
      %p40 = scmp.ne.s32.totalorder %s29, %s32
      %p41 = scmp.eq.s32.totalorder %s24, 3
      %p42 = por %p40, %p41
      %p43 = scmp.ne.s32.totalorder %s32, %s33
      %p44 = scmp.eq.s32.totalorder %s24, 0
      %p45 = por %p43, %p44
      %p46 = scmp.ne.s32.totalorder %s32, %s33
      %p47 = scmp.eq.s32.totalorder %s25, 3
      %p48 = por %p46, %p47
      %p50 = scmp.ne.s32.totalorder %s33, %s49
      %p51 = scmp.eq.s32.totalorder %s25, 0
      %p52 = por %p50, %p51
      %s54 = sadd.s32 %s53, 1
      %p57 = scmp.eq.s32.totalorder %s19, 3
      %p58 = scmp.ne.s32.totalorder %s53, %s55
      %p59 = scmp.eq.s32.totalorder %s19, 0
      %p60 = por %p58, %p59
      %p61 = scmp.ne.s32.totalorder %s53, %s55
      %p62 = scmp.eq.s32.totalorder %s24, 3
      %p63 = por %p61, %p62
      %p64 = scmp.ne.s32.totalorder %s55, %s56
      %p65 = scmp.eq.s32.totalorder %s24, 0
      %p66 = por %p64, %p65
      %p67 = scmp.ne.s32.totalorder %s55, %s56
      %p68 = scmp.eq.s32.totalorder %s25, 3
      %p69 = por %p67, %p68
      %p71 = scmp.ne.s32.totalorder %s56, %s70
      %p72 = scmp.eq.s32.totalorder %s25, 0
      %p73 = por %p71, %p72
      %s75 = sadd.s32 %s74, 1
      %p78 = scmp.eq.s32.totalorder %s19, 3
      %p79 = scmp.ne.s32.totalorder %s74, %s76
      %p80 = scmp.eq.s32.totalorder %s19, 0
      %p81 = por %p79, %p80
      %p82 = scmp.ne.s32.totalorder %s74, %s76
      %p83 = scmp.eq.s32.totalorder %s24, 3
      %p84 = por %p82, %p83
      %p85 = scmp.ne.s32.totalorder %s76, %s77
      %p86 = scmp.eq.s32.totalorder %s24, 0
      %p87 = por %p85, %p86
      %p88 = scmp.ne.s32.totalorder %s76, %s77
      %p89 = scmp.eq.s32.totalorder %s25, 3
      %p90 = por %p88, %p89
      %p92 = scmp.ne.s32.totalorder %s77, %s91
      %p93 = scmp.eq.s32.totalorder %s25, 0
      %p94 = por %p92, %p93
      %s96 = sadd.s32 %s95, 1
      %p99 = scmp.eq.s32.totalorder %s19, 3
      %p100 = scmp.ne.s32.totalorder %s95, %s97
      %p101 = scmp.eq.s32.totalorder %s19, 0
      %p102 = por %p100, %p101
      %p103 = scmp.ne.s32.totalorder %s95, %s97
      %p104 = scmp.eq.s32.totalorder %s24, 3
      %p105 = por %p103, %p104
      %p106 = scmp.ne.s32.totalorder %s97, %s98
      %p107 = scmp.eq.s32.totalorder %s24, 0
      %p108 = por %p106, %p107
      %p109 = scmp.ne.s32.totalorder %s97, %s98
      %p110 = scmp.eq.s32.totalorder %s25, 3
      %p111 = por %p109, %p110
      %p113 = scmp.ne.s32.totalorder %s98, %s112
      %p114 = scmp.eq.s32.totalorder %s25, 0
      %p115 = por %p113, %p114
      %s117 = sadd.s32 %s116, 1
      %p120 = scmp.eq.s32.totalorder %s19, 3
      %p121 = scmp.ne.s32.totalorder %s116, %s118
      %p122 = scmp.eq.s32.totalorder %s19, 0
      %p123 = por %p121, %p122
      %p124 = scmp.ne.s32.totalorder %s116, %s118
      %p125 = scmp.eq.s32.totalorder %s24, 3
      %p126 = por %p124, %p125
      %p127 = scmp.ne.s32.totalorder %s118, %s119
      %p128 = scmp.eq.s32.totalorder %s24, 0
      %p129 = por %p127, %p128
      %p130 = scmp.ne.s32.totalorder %s118, %s119
      %p131 = scmp.eq.s32.totalorder %s25, 3
      %p132 = por %p130, %p131
      %p134 = scmp.ne.s32.totalorder %s119, %s133
      %p135 = scmp.eq.s32.totalorder %s25, 0
      %p136 = por %p134, %p135
      %s138 = sadd.s32 %s137, 1
      %p141 = scmp.eq.s32.totalorder %s19, 3
      %p142 = scmp.ne.s32.totalorder %s137, %s139
      %p143 = scmp.eq.s32.totalorder %s19, 0
      %p144 = por %p142, %p143
      %p145 = scmp.ne.s32.totalorder %s137, %s139
      %p146 = scmp.eq.s32.totalorder %s24, 3
      %p147 = por %p145, %p146
      %p148 = scmp.ne.s32.totalorder %s139, %s140
      %p149 = scmp.eq.s32.totalorder %s24, 0
      %p150 = por %p148, %p149
      %p151 = scmp.ne.s32.totalorder %s139, %s140
      %p152 = scmp.eq.s32.totalorder %s25, 3
      %p153 = por %p151, %p152
      %p155 = scmp.ne.s32.totalorder %s140, %s154
      %p156 = scmp.eq.s32.totalorder %s25, 0
      %p157 = por %p155, %p156
      %s159 = sadd.s32 %s158, 1
      %p162 = scmp.eq.s32.totalorder %s19, 3
      %p163 = scmp.ne.s32.totalorder %s158, %s160
      %p164 = scmp.eq.s32.totalorder %s19, 0
      %p165 = por %p163, %p164
      %p166 = scmp.ne.s32.totalorder %s158, %s160
      %p167 = scmp.eq.s32.totalorder %s24, 3
      %p168 = por %p166, %p167
      %p169 = scmp.ne.s32.totalorder %s160, %s161
      %p170 = scmp.eq.s32.totalorder %s24, 0
      %p171 = por %p169, %p170
      %p172 = scmp.ne.s32.totalorder %s160, %s161
      %p173 = scmp.eq.s32.totalorder %s25, 3
      %p174 = por %p172, %p173
      %p176 = scmp.ne.s32.totalorder %s161, %s175
      %p177 = scmp.eq.s32.totalorder %s25, 0
      %p178 = por %p176, %p177
      %s180 = sadd.s32 %s179, 1
      %p183 = scmp.eq.s32.totalorder %s19, 3
      %p184 = scmp.ne.s32.totalorder %s179, %s181
      %p185 = scmp.eq.s32.totalorder %s19, 0
      %p186 = por %p184, %p185
      %p187 = scmp.ne.s32.totalorder %s179, %s181
      %p188 = scmp.eq.s32.totalorder %s24, 3
      %p189 = por %p187, %p188
      %p190 = scmp.ne.s32.totalorder %s181, %s182
      %p191 = scmp.eq.s32.totalorder %s24, 0
      %p192 = por %p190, %p191
      %p193 = scmp.ne.s32.totalorder %s181, %s182
      %p194 = scmp.eq.s32.totalorder %s25, 3
      %p195 = por %p193, %p194
      %p197 = scmp.ne.s32.totalorder %s182, %s196
      %p198 = scmp.eq.s32.totalorder %s25, 0
      %p199 = por %p197, %p198
      %s201 = sadd.s32 %s200, 1
      %p204 = scmp.eq.s32.totalorder %s19, 3
      %p205 = scmp.ne.s32.totalorder %s200, %s202
      %p206 = scmp.eq.s32.totalorder %s19, 0
      %p207 = por %p205, %p206
      %p208 = scmp.ne.s32.totalorder %s200, %s202
      %p209 = scmp.eq.s32.totalorder %s24, 3
      %p210 = por %p208, %p209
      %p211 = scmp.ne.s32.totalorder %s202, %s203
      %p212 = scmp.eq.s32.totalorder %s24, 0
      %p213 = por %p211, %p212
      %p214 = scmp.ne.s32.totalorder %s202, %s203
      %p215 = scmp.eq.s32.totalorder %s25, 3
      %p216 = por %p214, %p215
      %p218 = scmp.ne.s32.totalorder %s203, %s217
      %p219 = scmp.eq.s32.totalorder %s25, 0
      %p220 = por %p218, %p219
      %s221 = ssub.s32 %s19, %s26
      %p222 = scmp.eq.s32.totalorder %s221, 0
      %s224 = sadd.s32 %s223, 1
      %s225 = scalar_select %p222, %s223, %s224
      %p228 = pneg %p222
      %p229 = scmp.eq.s32.totalorder %s19, 3
      %p230 = por %p228, %p229
      %p231 = scmp.ne.s32.totalorder %s223, %s226
      %p232 = scmp.eq.s32.totalorder %s19, 0
      %p233 = por %p231, %p232
      %p234 = scmp.ne.s32.totalorder %s223, %s226
      %p235 = scmp.eq.s32.totalorder %s24, 3
      %p236 = por %p234, %p235
      %p237 = scmp.ne.s32.totalorder %s226, %s227
      %p238 = scmp.eq.s32.totalorder %s24, 0
      %p239 = por %p237, %p238
      %p240 = scmp.ne.s32.totalorder %s226, %s227
      %p241 = scmp.eq.s32.totalorder %s25, 3
      %p242 = por %p240, %p241
      %p244 = scmp.ne.s32.totalorder %s227, %s243
      %p245 = scmp.eq.s32.totalorder %s25, 0
      %p246 = por %p244, %p245
      %p247 = scmp.le.s32.totalorder 1, %s19
      %p248 = scmp.lt.s32.totalorder %s19, 5
      %p249 = pnand %p247, %p248
      %p250 = pneg %p249
      // Predicated region
      $region9: #{tpu_custom_call.1} parent=5 // pred_check
        _
      $region10: #{tpu_custom_call.1} parent=5 // pred_check_branch
        %252 = sbr.rel (%p249) target = $region12
      $region11: #{tpu_custom_call.1} parent=5 // pred_region
        %s253 = ssub.s32 %s19, 1
        // Predicated region
        $region13: #{tpu_custom_call.1} parent=11 // pred_check
          %p254 = pneg %p66
        $region14: #{tpu_custom_call.1} parent=11 // pred_check_branch
          %256 = sbr.rel (%p254) target = $region16
        $region15: #{tpu_custom_call.1} parent=11 // pred_region
          _
        $region16: #{tpu_custom_call.1} parent=11 // pred_fallthru
          _
        // Predicated region
        $region17: #{tpu_custom_call.1} parent=11 // pred_check
          %p257 = pneg %p87
        $region18: #{tpu_custom_call.1} parent=11 // pred_check_branch
          %259 = sbr.rel (%p257) target = $region20
        $region19: #{tpu_custom_call.1} parent=11 // pred_region
          _
        $region20: #{tpu_custom_call.1} parent=11 // pred_fallthru
          _
        // Predicated region
        $region21: #{tpu_custom_call.1} parent=11 // pred_check
          %p260 = pneg %p108
        $region22: #{tpu_custom_call.1} parent=11 // pred_check_branch
          %262 = sbr.rel (%p260) target = $region24
        $region23: #{tpu_custom_call.1} parent=11 // pred_region
          _
        $region24: #{tpu_custom_call.1} parent=11 // pred_fallthru
          _
        // Predicated region
        $region25: #{tpu_custom_call.1} parent=11 // pred_check
          %p263 = pneg %p129
        $region26: #{tpu_custom_call.1} parent=11 // pred_check_branch
          %265 = sbr.rel (%p263) target = $region28
        $region27: #{tpu_custom_call.1} parent=11 // pred_region
          _
        $region28: #{tpu_custom_call.1} parent=11 // pred_fallthru
          _
        // Predicated region
        $region29: #{tpu_custom_call.1} parent=11 // pred_check
          %p266 = pneg %p150
        $region30: #{tpu_custom_call.1} parent=11 // pred_check_branch
          %268 = sbr.rel (%p266) target = $region32
        $region31: #{tpu_custom_call.1} parent=11 // pred_region
          _
        $region32: #{tpu_custom_call.1} parent=11 // pred_fallthru
          _
        // Predicated region
        $region33: #{tpu_custom_call.1} parent=11 // pred_check
          %p269 = pneg %p171
        $region34: #{tpu_custom_call.1} parent=11 // pred_check_branch
          %271 = sbr.rel (%p269) target = $region36
        $region35: #{tpu_custom_call.1} parent=11 // pred_region
          _
        $region36: #{tpu_custom_call.1} parent=11 // pred_fallthru
          _
        // Predicated region
        $region37: #{tpu_custom_call.1} parent=11 // pred_check
          %p272 = pneg %p192
        $region38: #{tpu_custom_call.1} parent=11 // pred_check_branch
          %274 = sbr.rel (%p272) target = $region40
        $region39: #{tpu_custom_call.1} parent=11 // pred_region
          _
        $region40: #{tpu_custom_call.1} parent=11 // pred_fallthru
          _
        // Predicated region
        $region41: #{tpu_custom_call.1} parent=11 // pred_check
          %p275 = pneg %p213
        $region42: #{tpu_custom_call.1} parent=11 // pred_check_branch
          %277 = sbr.rel (%p275) target = $region44
        $region43: #{tpu_custom_call.1} parent=11 // pred_region
          _
        $region44: #{tpu_custom_call.1} parent=11 // pred_fallthru
          _
      $region12: #{tpu_custom_call.1} parent=5 // pred_fallthru
        _
      %p278 = scmp.lt.s32.totalorder %s19, 4
      // Predicated region
      $region45: #{tpu_custom_call.1} parent=5 // pred_check
        %p279 = pneg %p278
      $region46: #{tpu_custom_call.1} parent=5 // pred_check_branch
        %281 = sbr.rel (%p279) target = $region48
      $region47: #{tpu_custom_call.1} parent=5 // pred_region
        // Predicated region
        $region49: #{tpu_custom_call.1} parent=47 // pred_check
          %p282 = pneg %p39
        $region50: #{tpu_custom_call.1} parent=47 // pred_check_branch
          %284 = sbr.rel (%p282) target = $region52
        $region51: #{tpu_custom_call.1} parent=47 // pred_region
          %s285 = smul.u32 32, %s19
          %s286 = ssub.s32 125, %s285
          %p287 = scmp.lt.s32.totalorder %s286, 32
          %s288 = scalar_select %p287, %s286, 32
          %s289 = smul.u32 128, %s288
          %p290 = scmp.lt.s32.totalorder %s285, 124
          %s291 = scalar_select %p290, %s285, 124
          %s292 = smul.addr %s291, 8
          %s293 = scalar_lea.vmem %s0, %s292
          %s294 = smul.u32 32, %s19
          %s295 = ssub.s32 125, %s294
          %p296 = scmp.lt.s32.totalorder %s295, 32
          %s297 = scalar_select %p296, %s295, 32
          %s298 = smul.u32 128, %s297
        $region52: #{tpu_custom_call.1} parent=47 // pred_fallthru
          _
      $region48: #{tpu_custom_call.1} parent=5 // pred_fallthru
        _
      %p299 = scmp.le.s32.totalorder 1, %s19
      %p300 = scmp.lt.s32.totalorder %s19, 5
      %p301 = pnand %p299, %p300
      %p302 = pneg %p301
      // Predicated region
      $region53: #{tpu_custom_call.1} parent=5 // pred_check
        _
      $region54: #{tpu_custom_call.1} parent=5 // pred_check_branch
        %304 = sbr.rel (%p301) target = $region56
      $region55: #{tpu_custom_call.1} parent=5 // pred_region
        %s305 = ssub.s32 %s19, 1
        %s306 = smul.u32 32, %s24
        %s307 = ssub.s32 125, %s306
        %p308 = scmp.lt.s32.totalorder %s307, 32
        %s309 = scalar_select %p308, %s307, 32
        %s310 = smul.u32 128, %s309
        %p311 = scmp.lt.s32.totalorder %s306, 124
        %s312 = scalar_select %p311, %s306, 124
        %s313 = smul.addr %s312, 8
        %s314 = scalar_lea.vmem %s0, %s313
        %p315 = pneg %p45
        %p316 = pneg %p42
        %p317 = pneg %p66
        %p318 = pneg %p63
        %p319 = pneg %p87
        %p320 = pneg %p84
        %p321 = pneg %p108
        %p322 = pneg %p105
        %p323 = pneg %p129
        %p324 = pneg %p126
        %p325 = pneg %p150
        %p326 = pneg %p147
        %p327 = pneg %p171
        %p328 = pneg %p168
        %p329 = pneg %p192
        %p330 = pneg %p189
        %p331 = pneg %p213
        %p332 = pneg %p210
        %p333 = pneg %p239
        %p334 = pneg %p236
        %s335 = sand.u32 %s226, 1
        %s336 = scalar_lea.sflag [#allocation4], %s335
        %s337 = sand.u32 %s226, 1
        %s338 = smul.addr %s337, 2
        %s339 = scalar_lea.vmem [#allocation3], %s338
        %s340 = smul.u32 32, %s24
        %s341 = ssub.s32 125, %s340
        %p342 = scmp.lt.s32.totalorder %s341, 32
        %s343 = scalar_select %p342, %s341, 32
        %s344 = smul.u32 128, %s343
        %p345 = scmp.lt.s32.totalorder %s340, 124
        %s346 = scalar_select %p345, %s340, 124
        %s347 = smul.addr %s346, 8
        %s348 = scalar_lea.vmem %s0, %s347
        %s349 = smul.u32 32, %s24
        %s350 = ssub.s32 125, %s349
        %p351 = scmp.lt.s32.totalorder %s350, 32
        %s352 = scalar_select %p351, %s350, 32
        %s353 = smul.u32 128, %s352
        %s354 = smul.u32 2, %s24
        %v356 = vld [vmem:[%s348] sm:$0xff]
        %v357 = vld [vmem:[%s348 + $0x8] sm:$0xff]
        %v358 = vld [vmem:[%s348 + $0x10] sm:$0xff]
        %v359 = vld [vmem:[%s348 + $0x18] sm:$0xff]
        %v360 = vld [vmem:[%s348 + $0x20] sm:$0xff]
        %v361 = vld [vmem:[%s348 + $0x28] sm:$0xff]
        %v362 = vld [vmem:[%s348 + $0x30] sm:$0xff]
        %v363 = vld [vmem:[%s348 + $0x38] sm:$0xff]
        %v364 = vld [vmem:[%s348 + $0x40] sm:$0xff]
        %v365 = vld [vmem:[%s348 + $0x48] sm:$0xff]
        %v366 = vld [vmem:[%s348 + $0x50] sm:$0xff]
        %v367 = vld [vmem:[%s348 + $0x58] sm:$0xff]
        %v368 = vld [vmem:[%s348 + $0x60] sm:$0xff]
        %v369 = vld [vmem:[%s348 + $0x68] sm:$0xff]
        %v370 = vld [vmem:[%s348 + $0x70] sm:$0xff]
        %v371 = vld [vmem:[%s348 + $0x78] sm:$0xff]
        %v372 = vld [vmem:[%s348 + $0x80] sm:$0xff]
        %v373 = vld [vmem:[%s348 + $0x88] sm:$0xff]
        %v374 = vld [vmem:[%s348 + $0x90] sm:$0xff]
        %v375 = vld [vmem:[%s348 + $0x98] sm:$0xff]
        %v376 = vld [vmem:[%s348 + $0xa0] sm:$0xff]
        %v377 = vld [vmem:[%s348 + $0xa8] sm:$0xff]
        %v378 = vld [vmem:[%s348 + $0xb0] sm:$0xff]
        %v379 = vld [vmem:[%s348 + $0xb8] sm:$0xff]
        %v380 = vld [vmem:[%s348 + $0xc0] sm:$0xff]
        %v381 = vld [vmem:[%s348 + $0xc8] sm:$0xff]
        %v382 = vld [vmem:[%s348 + $0xd0] sm:$0xff]
        %v383 = vld [vmem:[%s348 + $0xd8] sm:$0xff]
        %v384 = vld [vmem:[%s348 + $0xe0] sm:$0xff]
        %v385 = vld [vmem:[%s348 + $0xe8] sm:$0xff]
        %v386 = vld [vmem:[%s348 + $0xf0] sm:$0xff]
        %v387 = vld [vmem:[%s348 + $0xf8] sm:$0xff]
        %v388 = vpack.c.bf16 %v357, %v356
        %v389 = vpack.c.bf16 %v359, %v358
        %v390 = vpack.c.bf16 %v361, %v360
        %v391 = vpack.c.bf16 %v363, %v362
        %v392 = vpack.c.bf16 %v365, %v364
        %v393 = vpack.c.bf16 %v367, %v366
        %v394 = vpack.c.bf16 %v369, %v368
        %v395 = vpack.c.bf16 %v371, %v370
        %v396 = vpack.c.bf16 %v373, %v372
        %v397 = vpack.c.bf16 %v375, %v374
        %v398 = vpack.c.bf16 %v377, %v376
        %v399 = vpack.c.bf16 %v379, %v378
        %v400 = vpack.c.bf16 %v381, %v380
        %v401 = vpack.c.bf16 %v383, %v382
        %v402 = vpack.c.bf16 %v385, %v384
        %v403 = vpack.c.bf16 %v387, %v386
        %v404 = vld [vmem:[%s1] sm:$0xff]
        %v405 = vld [vmem:[%s1 + $0x8] sm:$0xff]
        %v406 = vld [vmem:[%s1 + $0x10] sm:$0xff]
        %v407 = vld [vmem:[%s1 + $0x18] sm:$0xff]
        %v412 = vunpack.c.l.b16 %v404
        %v413 = vunpack.c.h.b16 %v404
        %v414 = vunpack.c.l.b16 %v405
        %v415 = vunpack.c.h.b16 %v405
        %v416 = vunpack.c.l.b16 %v406
        %v417 = vunpack.c.h.b16 %v406
        %v418 = vunpack.c.l.b16 %v407
        %v419 = vunpack.c.h.b16 %v407
        %v420 = vpack.c.b16 %v414, %v412
        %v421 = vpack.c.b16 %v415, %v413
        %v422 = vpack.c.b16 %v418, %v416
        %v423 = vpack.c.b16 %v419, %v417
        %vm428 = vcmask 261120
        %v430 = vsel %vm428, %v388, 0
        %v433 = vsel %vm428, %v389, 0
        %v436 = vsel %vm428, %v390, 0
        %v439 = vsel %vm428, %v391, 0
        %v442 = vsel %vm428, %v392, 0
        %v445 = vsel %vm428, %v393, 0
        %v448 = vsel %vm428, %v394, 0
        %v451 = vsel %vm428, %v395, 0
        %v454 = vsel %vm428, %v396, 0
        %v457 = vsel %vm428, %v397, 0
        %v460 = vsel %vm428, %v398, 0
        %v463 = vsel %vm428, %v399, 0
        %v466 = vsel %vm428, %v400, 0
        %v469 = vsel %vm428, %v401, 0
        %v472 = vsel %vm428, %v402, 0
        %v475 = vsel %vm428, %v403, 0
        %477 = vmatprep.subr.bf16.mxu0 %v421
        %478 = vmatpush1.bf16.msra.mxu0 %v420
        %479 = vmatprep.subr.bf16.mxu0 %v423
        %480 = vmatpush1.bf16.msra.mxu0 %v422
        %481 = vmatprep.subr.bf16.mxu0 0
        %482 = vmatpush1.bf16.msra.mxu0 0
        %483 = vmatprep.subr.bf16.mxu0 0
        %484 = vmatpush1.bf16.msra.mxu0 0
        %485 = vmatprep.subr.bf16.mxu0 0
        %486 = vmatpush1.bf16.msra.mxu0 0
        %487 = vmatprep.subr.bf16.mxu0 0
        %488 = vmatpush1.bf16.msra.mxu0 0
        %489 = vmatprep.subr.bf16.mxu0 0
        %490 = vmatpush1.bf16.msra.mxu0 0
        %491 = vmatprep.subr.bf16.mxu0 0
        %492 = vmatpush1.bf16.msra.mxu0 0
        %493 = vmatprep.subr.bf16.mxu0 0
        %494 = vmatpush1.bf16.msra.mxu0 0
        %495 = vmatprep.subr.bf16.mxu0 0
        %496 = vmatpush1.bf16.msra.mxu0 0
        %497 = vmatprep.subr.bf16.mxu0 0
        %498 = vmatpush1.bf16.msra.mxu0 0
        %499 = vmatprep.subr.bf16.mxu0 0
        %500 = vmatpush1.bf16.msra.mxu0 0
        %501 = vmatprep.subr.bf16.mxu0 0
        %502 = vmatpush1.bf16.msra.mxu0 0
        %503 = vmatprep.subr.bf16.mxu0 0
        %504 = vmatpush1.bf16.msra.mxu0 0
        %505 = vmatprep.subr.bf16.mxu0 0
        %506 = vmatpush1.bf16.msra.mxu0 0
        %507 = vmatprep.subr.bf16.mxu0 0
        %508 = vmatpush1.bf16.msra.mxu0 0
        %509 = vmatprep.mubr.bf16.mxu0 0
        %510 = vmatmul.mubr.bf16.gmra.mrb[0].mxu0 %v430
        %v511 = vpop.f32.mrb[0].mxu0
        %v512 = vadd.f32 0.0, %v511
        %v513 = vpop.f32.mrb[0].mxu0
        %v514 = vadd.f32 0.0, %v513
        %v515 = vpop.f32.mrb[0].mxu0
        %v516 = vadd.f32 0.0, %v515
        %v517 = vpop.f32.mrb[0].mxu0
        %v518 = vadd.f32 0.0, %v517
        %519 = vmatprep.mubr.bf16.mxu0 0
        %520 = vmatmul.mubr.bf16.gmra.mrb[0].mxu0 %v433
        %v521 = vpop.f32.mrb[0].mxu0
        %v522 = vadd.f32 0.0, %v521
        %v523 = vpop.f32.mrb[0].mxu0
        %v524 = vadd.f32 0.0, %v523
        %v525 = vpop.f32.mrb[0].mxu0
        %v526 = vadd.f32 0.0, %v525
        %v527 = vpop.f32.mrb[0].mxu0
        %v528 = vadd.f32 0.0, %v527
        %529 = vmatprep.mubr.bf16.mxu0 0
        %530 = vmatmul.mubr.bf16.gmra.mrb[0].mxu0 %v436
        %v531 = vpop.f32.mrb[0].mxu0
        %v532 = vadd.f32 0.0, %v531
        %v533 = vpop.f32.mrb[0].mxu0
        %v534 = vadd.f32 0.0, %v533
        %v535 = vpop.f32.mrb[0].mxu0
        %v536 = vadd.f32 0.0, %v535
        %v537 = vpop.f32.mrb[0].mxu0
        %v538 = vadd.f32 0.0, %v537
        %539 = vmatprep.mubr.bf16.mxu0 0
        %540 = vmatmul.mubr.bf16.gmra.mrb[0].mxu0 %v439
        %v541 = vpop.f32.mrb[0].mxu0
        %v542 = vadd.f32 0.0, %v541
        %v543 = vpop.f32.mrb[0].mxu0
        %v544 = vadd.f32 0.0, %v543
        %v545 = vpop.f32.mrb[0].mxu0
        %v546 = vadd.f32 0.0, %v545
        %v547 = vpop.f32.mrb[0].mxu0
        %v548 = vadd.f32 0.0, %v547
        %549 = vmatprep.mubr.bf16.mxu0 0
        %550 = vmatmul.mubr.bf16.gmra.mrb[0].mxu0 %v442
        %v551 = vpop.f32.mrb[0].mxu0
        %v552 = vadd.f32 0.0, %v551
        %v553 = vpop.f32.mrb[0].mxu0
        %v554 = vadd.f32 0.0, %v553
        %v555 = vpop.f32.mrb[0].mxu0
        %v556 = vadd.f32 0.0, %v555
        %v557 = vpop.f32.mrb[0].mxu0
        %v558 = vadd.f32 0.0, %v557
        %559 = vmatprep.mubr.bf16.mxu0 0
        %560 = vmatmul.mubr.bf16.gmra.mrb[0].mxu0 %v445
        %v561 = vpop.f32.mrb[0].mxu0
        %v562 = vadd.f32 0.0, %v561
        %v563 = vpop.f32.mrb[0].mxu0
        %v564 = vadd.f32 0.0, %v563
        %v565 = vpop.f32.mrb[0].mxu0
        %v566 = vadd.f32 0.0, %v565
        %v567 = vpop.f32.mrb[0].mxu0
        %v568 = vadd.f32 0.0, %v567
        %569 = vmatprep.mubr.bf16.mxu0 0
        %570 = vmatmul.mubr.bf16.gmra.mrb[0].mxu0 %v448
        %v571 = vpop.f32.mrb[0].mxu0
        %v572 = vadd.f32 0.0, %v571
        %v573 = vpop.f32.mrb[0].mxu0
        %v574 = vadd.f32 0.0, %v573
        %v575 = vpop.f32.mrb[0].mxu0
        %v576 = vadd.f32 0.0, %v575
        %v577 = vpop.f32.mrb[0].mxu0
        %v578 = vadd.f32 0.0, %v577
        %579 = vmatprep.mubr.bf16.mxu0 0
        %580 = vmatmul.mubr.bf16.gmra.mrb[0].mxu0 %v451
        %v581 = vpop.f32.mrb[0].mxu0
        %v582 = vadd.f32 0.0, %v581
        %v583 = vpop.f32.mrb[0].mxu0
        %v584 = vadd.f32 0.0, %v583
        %v585 = vpop.f32.mrb[0].mxu0
        %v586 = vadd.f32 0.0, %v585
        %v587 = vpop.f32.mrb[0].mxu0
        %v588 = vadd.f32 0.0, %v587
        %589 = vmatprep.mubr.bf16.mxu0 0
        %590 = vmatmul.mubr.bf16.gmra.mrb[0].mxu0 %v454
        %v591 = vpop.f32.mrb[0].mxu0
        %v592 = vadd.f32 0.0, %v591
        %v593 = vpop.f32.mrb[0].mxu0
        %v594 = vadd.f32 0.0, %v593
        %v595 = vpop.f32.mrb[0].mxu0
        %v596 = vadd.f32 0.0, %v595
        %v597 = vpop.f32.mrb[0].mxu0
        %v598 = vadd.f32 0.0, %v597
        %599 = vmatprep.mubr.bf16.mxu0 0
        %600 = vmatmul.mubr.bf16.gmra.mrb[0].mxu0 %v457
        %v601 = vpop.f32.mrb[0].mxu0
        %v602 = vadd.f32 0.0, %v601
        %v603 = vpop.f32.mrb[0].mxu0
        %v604 = vadd.f32 0.0, %v603
        %v605 = vpop.f32.mrb[0].mxu0
        %v606 = vadd.f32 0.0, %v605
        %v607 = vpop.f32.mrb[0].mxu0
        %v608 = vadd.f32 0.0, %v607
        %609 = vmatprep.mubr.bf16.mxu0 0
        %610 = vmatmul.mubr.bf16.gmra.mrb[0].mxu0 %v460
        %v611 = vpop.f32.mrb[0].mxu0
        %v612 = vadd.f32 0.0, %v611
        %v613 = vpop.f32.mrb[0].mxu0
        %v614 = vadd.f32 0.0, %v613
        %v615 = vpop.f32.mrb[0].mxu0
        %v616 = vadd.f32 0.0, %v615
        %v617 = vpop.f32.mrb[0].mxu0
        %v618 = vadd.f32 0.0, %v617
        %619 = vmatprep.mubr.bf16.mxu0 0
        %620 = vmatmul.mubr.bf16.gmra.mrb[0].mxu0 %v463
        %v621 = vpop.f32.mrb[0].mxu0
        %v622 = vadd.f32 0.0, %v621
        %v623 = vpop.f32.mrb[0].mxu0
        %v624 = vadd.f32 0.0, %v623
        %v625 = vpop.f32.mrb[0].mxu0
        %v626 = vadd.f32 0.0, %v625
        %v627 = vpop.f32.mrb[0].mxu0
        %v628 = vadd.f32 0.0, %v627
        %629 = vmatprep.mubr.bf16.mxu0 0
        %630 = vmatmul.mubr.bf16.gmra.mrb[0].mxu0 %v466
        %v631 = vpop.f32.mrb[0].mxu0
        %v632 = vadd.f32 0.0, %v631
        %v633 = vpop.f32.mrb[0].mxu0
        %v634 = vadd.f32 0.0, %v633
        %v635 = vpop.f32.mrb[0].mxu0
        %v636 = vadd.f32 0.0, %v635
        %v637 = vpop.f32.mrb[0].mxu0
        %v638 = vadd.f32 0.0, %v637
        %639 = vmatprep.mubr.bf16.mxu0 0
        %640 = vmatmul.mubr.bf16.gmra.mrb[0].mxu0 %v469
        %v641 = vpop.f32.mrb[0].mxu0
        %v642 = vadd.f32 0.0, %v641
        %v643 = vpop.f32.mrb[0].mxu0
        %v644 = vadd.f32 0.0, %v643
        %v645 = vpop.f32.mrb[0].mxu0
        %v646 = vadd.f32 0.0, %v645
        %v647 = vpop.f32.mrb[0].mxu0
        %v648 = vadd.f32 0.0, %v647
        %649 = vmatprep.mubr.bf16.mxu0 0
        %650 = vmatmul.mubr.bf16.gmra.mrb[0].mxu0 %v472
        %v651 = vpop.f32.mrb[0].mxu0
        %v652 = vadd.f32 0.0, %v651
        %v653 = vpop.f32.mrb[0].mxu0
        %v654 = vadd.f32 0.0, %v653
        %v655 = vpop.f32.mrb[0].mxu0
        %v656 = vadd.f32 0.0, %v655
        %v657 = vpop.f32.mrb[0].mxu0
        %v658 = vadd.f32 0.0, %v657
        %659 = vmatprep.mubr.bf16.mxu0 0
        %660 = vmatmul.mubr.bf16.gmra.mrb[0].mxu0 %v475
        %v661 = vpop.f32.mrb[0].mxu0
        %v662 = vadd.f32 0.0, %v661
        %v663 = vpop.f32.mrb[0].mxu0
        %v664 = vadd.f32 0.0, %v663
        %v665 = vpop.f32.mrb[0].mxu0
        %v666 = vadd.f32 0.0, %v665
        %v667 = vpop.f32.mrb[0].mxu0
        %v668 = vadd.f32 0.0, %v667
        %669 = vdwg.mxu0
        %v670 = vpack.c.bf16 %v516, %v512
        %v671 = vpack.c.bf16 %v518, %v514
        %v672 = vpack.c.bf16 %v526, %v522
        %v673 = vpack.c.bf16 %v528, %v524
        %v674 = vpack.c.bf16 %v536, %v532
        %v675 = vpack.c.bf16 %v538, %v534
        %v676 = vpack.c.bf16 %v546, %v542
        %v677 = vpack.c.bf16 %v548, %v544
        %v678 = vpack.c.bf16 %v556, %v552
        %v679 = vpack.c.bf16 %v558, %v554
        %v680 = vpack.c.bf16 %v566, %v562
        %v681 = vpack.c.bf16 %v568, %v564
        %v682 = vpack.c.bf16 %v576, %v572
        %v683 = vpack.c.bf16 %v578, %v574
        %v684 = vpack.c.bf16 %v586, %v582
        %v685 = vpack.c.bf16 %v588, %v584
        %v686 = vpack.c.bf16 %v596, %v592
        %v687 = vpack.c.bf16 %v598, %v594
        %v688 = vpack.c.bf16 %v606, %v602
        %v689 = vpack.c.bf16 %v608, %v604
        %v690 = vpack.c.bf16 %v616, %v612
        %v691 = vpack.c.bf16 %v618, %v614
        %v692 = vpack.c.bf16 %v626, %v622
        %v693 = vpack.c.bf16 %v628, %v624
        %v694 = vpack.c.bf16 %v636, %v632
        %v695 = vpack.c.bf16 %v638, %v634
        %v696 = vpack.c.bf16 %v646, %v642
        %v697 = vpack.c.bf16 %v648, %v644
        %v698 = vpack.c.bf16 %v656, %v652
        %v699 = vpack.c.bf16 %v658, %v654
        %v700 = vpack.c.bf16 %v666, %v662
        %v701 = vpack.c.bf16 %v668, %v664
        %v702 = vld [vmem:[%s2] sm:$0x3]
        %v704 = vlaneseq
        %v705 = vshrl.u32 %v704, 7
        %v706 = vsub.s32 0, %v705
        %v707 = vrot.slane %v702, %v706
        %v708 = vlaneseq
        %v709 = vshrl.u32 %v708, 7
        %v710 = vsub.s32 1, %v709
        %v711 = vrot.slane %v702, %v710
        %v714 = vpack.c.bf16 %v707, %v707
        %v715 = vpack.c.bf16 %v711, %v711
        %v717 = vpack.i.b16 %v714, %v714
        %v719 = vlaneseq
        %v720 = vshrl.u32 %v719, 7
        %v721 = vsub.s32 0, %v720
        %v722 = vrot.slane %v717, %v721
        %v724 = vpack.i.b16 %v715, %v715
        %v726 = vlaneseq
        %v727 = vshrl.u32 %v726, 7
        %v728 = vsub.s32 0, %v727
        %v729 = vrot.slane %v724, %v728
        %v730 = vadd.bf16 %v670, %v722
        %v731 = vadd.bf16 %v671, %v729
        %v732 = vadd.bf16 %v672, %v722
        %v733 = vadd.bf16 %v673, %v729
        %v734 = vadd.bf16 %v674, %v722
        %v735 = vadd.bf16 %v675, %v729
        %v736 = vadd.bf16 %v676, %v722
        %v737 = vadd.bf16 %v677, %v729
        %v738 = vadd.bf16 %v678, %v722
        %v739 = vadd.bf16 %v679, %v729
        %v740 = vadd.bf16 %v680, %v722
        %v741 = vadd.bf16 %v681, %v729
        %v742 = vadd.bf16 %v682, %v722
        %v743 = vadd.bf16 %v683, %v729
        %v744 = vadd.bf16 %v684, %v722
        %v745 = vadd.bf16 %v685, %v729
        %v746 = vadd.bf16 %v686, %v722
        %v747 = vadd.bf16 %v687, %v729
        %v748 = vadd.bf16 %v688, %v722
        %v749 = vadd.bf16 %v689, %v729
        %v750 = vadd.bf16 %v690, %v722
        %v751 = vadd.bf16 %v691, %v729
        %v752 = vadd.bf16 %v692, %v722
        %v753 = vadd.bf16 %v693, %v729
        %v754 = vadd.bf16 %v694, %v722
        %v755 = vadd.bf16 %v695, %v729
        %v756 = vadd.bf16 %v696, %v722
        %v757 = vadd.bf16 %v697, %v729
        %v758 = vadd.bf16 %v698, %v722
        %v759 = vadd.bf16 %v699, %v729
        %v760 = vadd.bf16 %v700, %v722
        %v761 = vadd.bf16 %v701, %v729
        %v762 = vmax.bf16 %v730, 0
        %v763 = vmax.bf16 %v731, 0
        %v764 = vmax.bf16 %v732, 0
        %v765 = vmax.bf16 %v733, 0
        %v766 = vmax.bf16 %v734, 0
        %v767 = vmax.bf16 %v735, 0
        %v768 = vmax.bf16 %v736, 0
        %v769 = vmax.bf16 %v737, 0
        %v770 = vmax.bf16 %v738, 0
        %v771 = vmax.bf16 %v739, 0
        %v772 = vmax.bf16 %v740, 0
        %v773 = vmax.bf16 %v741, 0
        %v774 = vmax.bf16 %v742, 0
        %v775 = vmax.bf16 %v743, 0
        %v776 = vmax.bf16 %v744, 0
        %v777 = vmax.bf16 %v745, 0
        %v778 = vmax.bf16 %v746, 0
        %v779 = vmax.bf16 %v747, 0
        %v780 = vmax.bf16 %v748, 0
        %v781 = vmax.bf16 %v749, 0
        %v782 = vmax.bf16 %v750, 0
        %v783 = vmax.bf16 %v751, 0
        %v784 = vmax.bf16 %v752, 0
        %v785 = vmax.bf16 %v753, 0
        %v786 = vmax.bf16 %v754, 0
        %v787 = vmax.bf16 %v755, 0
        %v788 = vmax.bf16 %v756, 0
        %v789 = vmax.bf16 %v757, 0
        %v790 = vmax.bf16 %v758, 0
        %v791 = vmax.bf16 %v759, 0
        %v792 = vmax.bf16 %v760, 0
        %v793 = vmax.bf16 %v761, 0
        %v794 = vld [vmem:[%s3] sm:$0xf]
        %v795 = vld [vmem:[%s3 + $0x4] sm:$0xf]
        %v796 = vld [vmem:[%s3 + $0x8] sm:$0xf]
        %v797 = vld [vmem:[%s3 + $0xc] sm:$0xf]
        %v798 = vld [vmem:[%s3 + $0x10] sm:$0xf]
        %v799 = vld [vmem:[%s3 + $0x14] sm:$0xf]
        %v800 = vld [vmem:[%s3 + $0x18] sm:$0xf]
        %v801 = vld [vmem:[%s3 + $0x1c] sm:$0xf]
        %v802 = vld [vmem:[%s3 + $0x20] sm:$0xf]
        %v803 = vld [vmem:[%s3 + $0x24] sm:$0xf]
        %v804 = vld [vmem:[%s3 + $0x28] sm:$0xf]
        %v805 = vld [vmem:[%s3 + $0x2c] sm:$0xf]
        %v806 = vld [vmem:[%s3 + $0x30] sm:$0xf]
        %v807 = vld [vmem:[%s3 + $0x34] sm:$0xf]
        %v808 = vld [vmem:[%s3 + $0x38] sm:$0xf]
        %v809 = vld [vmem:[%s3 + $0x3c] sm:$0xf]
        %v810 = vld [vmem:[%s3 + $0x40] sm:$0xf]
        %v811 = vld [vmem:[%s3 + $0x44] sm:$0xf]
        %v812 = vld [vmem:[%s3 + $0x48] sm:$0xf]
        %v813 = vld [vmem:[%s3 + $0x4c] sm:$0xf]
        %v814 = vld [vmem:[%s3 + $0x50] sm:$0xf]
        %v815 = vld [vmem:[%s3 + $0x54] sm:$0xf]
        %v816 = vld [vmem:[%s3 + $0x58] sm:$0xf]
        %v817 = vld [vmem:[%s3 + $0x5c] sm:$0xf]
        %v818 = vld [vmem:[%s3 + $0x60] sm:$0xf]
        %v819 = vld [vmem:[%s3 + $0x64] sm:$0xf]
        %v820 = vld [vmem:[%s3 + $0x68] sm:$0xf]
        %v821 = vld [vmem:[%s3 + $0x6c] sm:$0xf]
        %v822 = vld [vmem:[%s3 + $0x70] sm:$0xf]
        %v823 = vld [vmem:[%s3 + $0x74] sm:$0xf]
        %v824 = vld [vmem:[%s3 + $0x78] sm:$0xf]
        %v825 = vld [vmem:[%s3 + $0x7c] sm:$0xf]
        %v858 = vunpack.c.l.b16 %v794
        %v859 = vunpack.c.l.b16 %v795
        %v860 = vunpack.c.l.b16 %v796
        %v861 = vunpack.c.l.b16 %v797
        %v862 = vunpack.c.l.b16 %v798
        %v863 = vunpack.c.l.b16 %v799
        %v864 = vunpack.c.l.b16 %v800
        %v865 = vunpack.c.l.b16 %v801
        %v866 = vunpack.c.l.b16 %v802
        %v867 = vunpack.c.l.b16 %v803
        %v868 = vunpack.c.l.b16 %v804
        %v869 = vunpack.c.l.b16 %v805
        %v870 = vunpack.c.l.b16 %v806
        %v871 = vunpack.c.l.b16 %v807
        %v872 = vunpack.c.l.b16 %v808
        %v873 = vunpack.c.l.b16 %v809
        %v874 = vunpack.c.l.b16 %v810
        %v875 = vunpack.c.l.b16 %v811
        %v876 = vunpack.c.l.b16 %v812
        %v877 = vunpack.c.l.b16 %v813
        %v878 = vunpack.c.l.b16 %v814
        %v879 = vunpack.c.l.b16 %v815
        %v880 = vunpack.c.l.b16 %v816
        %v881 = vunpack.c.l.b16 %v817
        %v882 = vunpack.c.l.b16 %v818
        %v883 = vunpack.c.l.b16 %v819
        %v884 = vunpack.c.l.b16 %v820
        %v885 = vunpack.c.l.b16 %v821
        %v886 = vunpack.c.l.b16 %v822
        %v887 = vunpack.c.l.b16 %v823
        %v888 = vunpack.c.l.b16 %v824
        %v889 = vunpack.c.l.b16 %v825
        %v890 = vpack.c.b16 %v859, %v858
        %v891 = vpack.c.b16 %v861, %v860
        %v892 = vpack.c.b16 %v863, %v862
        %v893 = vpack.c.b16 %v865, %v864
        %v894 = vpack.c.b16 %v867, %v866
        %v895 = vpack.c.b16 %v869, %v868
        %v896 = vpack.c.b16 %v871, %v870
        %v897 = vpack.c.b16 %v873, %v872
        %v898 = vpack.c.b16 %v875, %v874
        %v899 = vpack.c.b16 %v877, %v876
        %v900 = vpack.c.b16 %v879, %v878
        %v901 = vpack.c.b16 %v881, %v880
        %v902 = vpack.c.b16 %v883, %v882
        %v903 = vpack.c.b16 %v885, %v884
        %v904 = vpack.c.b16 %v887, %v886
        %v905 = vpack.c.b16 %v889, %v888
        %922 = vmatprep.subr.bf16.mxu0 0
        %923 = vmatpush1.bf16.msra.mxu0 %v890
        %924 = vmatprep.subr.bf16.mxu0 0
        %925 = vmatpush1.bf16.msra.mxu0 %v891
        %926 = vmatprep.subr.bf16.mxu0 0
        %927 = vmatpush1.bf16.msra.mxu0 %v892
        %928 = vmatprep.subr.bf16.mxu0 0
        %929 = vmatpush1.bf16.msra.mxu0 %v893
        %930 = vmatprep.subr.bf16.mxu0 0
        %931 = vmatpush1.bf16.msra.mxu0 %v894
        %932 = vmatprep.subr.bf16.mxu0 0
        %933 = vmatpush1.bf16.msra.mxu0 %v895
        %934 = vmatprep.subr.bf16.mxu0 0
        %935 = vmatpush1.bf16.msra.mxu0 %v896
        %936 = vmatprep.subr.bf16.mxu0 0
        %937 = vmatpush1.bf16.msra.mxu0 %v897
        %938 = vmatprep.subr.bf16.mxu0 0
        %939 = vmatpush1.bf16.msra.mxu0 %v898
        %940 = vmatprep.subr.bf16.mxu0 0
        %941 = vmatpush1.bf16.msra.mxu0 %v899
        %942 = vmatprep.subr.bf16.mxu0 0
        %943 = vmatpush1.bf16.msra.mxu0 %v900
        %944 = vmatprep.subr.bf16.mxu0 0
        %945 = vmatpush1.bf16.msra.mxu0 %v901
        %946 = vmatprep.subr.bf16.mxu0 0
        %947 = vmatpush1.bf16.msra.mxu0 %v902
        %948 = vmatprep.subr.bf16.mxu0 0
        %949 = vmatpush1.bf16.msra.mxu0 %v903
        %950 = vmatprep.subr.bf16.mxu0 0
        %951 = vmatpush1.bf16.msra.mxu0 %v904
        %952 = vmatprep.subr.bf16.mxu0 0
        %953 = vmatpush1.bf16.msra.mxu0 %v905
        %954 = vmatprep.mubr.bf16.mxu0 %v763
        %955 = vmatmul.mubr.bf16.gmra.mrb[0].mxu0 %v762
        %v956 = vpop.f32.mrb[0].mxu0
        %v957 = vadd.f32 0.0, %v956
        %v958 = vpop.f32.mrb[0].mxu0
        %v959 = vpop.f32.mrb[0].mxu0
        %v960 = vadd.f32 0.0, %v959
        %v961 = vpop.f32.mrb[0].mxu0
        %962 = vmatprep.mubr.bf16.mxu0 %v765
        %963 = vmatmul.mubr.bf16.gmra.mrb[0].mxu0 %v764
        %v964 = vpop.f32.mrb[0].mxu0
        %v965 = vadd.f32 0.0, %v964
        %v966 = vpop.f32.mrb[0].mxu0
        %v967 = vpop.f32.mrb[0].mxu0
        %v968 = vadd.f32 0.0, %v967
        %v969 = vpop.f32.mrb[0].mxu0
        %970 = vmatprep.mubr.bf16.mxu0 %v767
        %971 = vmatmul.mubr.bf16.gmra.mrb[0].mxu0 %v766
        %v972 = vpop.f32.mrb[0].mxu0
        %v973 = vadd.f32 0.0, %v972
        %v974 = vpop.f32.mrb[0].mxu0
        %v975 = vpop.f32.mrb[0].mxu0
        %v976 = vadd.f32 0.0, %v975
        %v977 = vpop.f32.mrb[0].mxu0
        %978 = vmatprep.mubr.bf16.mxu0 %v769
        %979 = vmatmul.mubr.bf16.gmra.mrb[0].mxu0 %v768
        %v980 = vpop.f32.mrb[0].mxu0
        %v981 = vadd.f32 0.0, %v980
        %v982 = vpop.f32.mrb[0].mxu0
        %v983 = vpop.f32.mrb[0].mxu0
        %v984 = vadd.f32 0.0, %v983
        %v985 = vpop.f32.mrb[0].mxu0
        %986 = vmatprep.mubr.bf16.mxu0 %v771
        %987 = vmatmul.mubr.bf16.gmra.mrb[0].mxu0 %v770
        %v988 = vpop.f32.mrb[0].mxu0
        %v989 = vadd.f32 0.0, %v988
        %v990 = vpop.f32.mrb[0].mxu0
        %v991 = vpop.f32.mrb[0].mxu0
        %v992 = vadd.f32 0.0, %v991
        %v993 = vpop.f32.mrb[0].mxu0
        %994 = vmatprep.mubr.bf16.mxu0 %v773
        %995 = vmatmul.mubr.bf16.gmra.mrb[0].mxu0 %v772
        %v996 = vpop.f32.mrb[0].mxu0
        %v997 = vadd.f32 0.0, %v996
        %v998 = vpop.f32.mrb[0].mxu0
        %v999 = vpop.f32.mrb[0].mxu0
        %v1000 = vadd.f32 0.0, %v999
        %v1001 = vpop.f32.mrb[0].mxu0
        %1002 = vmatprep.mubr.bf16.mxu0 %v775
        %1003 = vmatmul.mubr.bf16.gmra.mrb[0].mxu0 %v774
        %v1004 = vpop.f32.mrb[0].mxu0
        %v1005 = vadd.f32 0.0, %v1004
        %v1006 = vpop.f32.mrb[0].mxu0
        %v1007 = vpop.f32.mrb[0].mxu0
        %v1008 = vadd.f32 0.0, %v1007
        %v1009 = vpop.f32.mrb[0].mxu0
        %1010 = vmatprep.mubr.bf16.mxu0 %v777
        %1011 = vmatmul.mubr.bf16.gmra.mrb[0].mxu0 %v776
        %v1012 = vpop.f32.mrb[0].mxu0
        %v1013 = vadd.f32 0.0, %v1012
        %v1014 = vpop.f32.mrb[0].mxu0
        %v1015 = vpop.f32.mrb[0].mxu0
        %v1016 = vadd.f32 0.0, %v1015
        %v1017 = vpop.f32.mrb[0].mxu0
        %1018 = vmatprep.mubr.bf16.mxu0 %v779
        %1019 = vmatmul.mubr.bf16.gmra.mrb[0].mxu0 %v778
        %v1020 = vpop.f32.mrb[0].mxu0
        %v1021 = vadd.f32 0.0, %v1020
        %v1022 = vpop.f32.mrb[0].mxu0
        %v1023 = vpop.f32.mrb[0].mxu0
        %v1024 = vadd.f32 0.0, %v1023
        %v1025 = vpop.f32.mrb[0].mxu0
        %1026 = vmatprep.mubr.bf16.mxu0 %v781
        %1027 = vmatmul.mubr.bf16.gmra.mrb[0].mxu0 %v780
        %v1028 = vpop.f32.mrb[0].mxu0
        %v1029 = vadd.f32 0.0, %v1028
        %v1030 = vpop.f32.mrb[0].mxu0
        %v1031 = vpop.f32.mrb[0].mxu0
        %v1032 = vadd.f32 0.0, %v1031
        %v1033 = vpop.f32.mrb[0].mxu0
        %1034 = vmatprep.mubr.bf16.mxu0 %v783
        %1035 = vmatmul.mubr.bf16.gmra.mrb[0].mxu0 %v782
        %v1036 = vpop.f32.mrb[0].mxu0
        %v1037 = vadd.f32 0.0, %v1036
        %v1038 = vpop.f32.mrb[0].mxu0
        %v1039 = vpop.f32.mrb[0].mxu0
        %v1040 = vadd.f32 0.0, %v1039
        %v1041 = vpop.f32.mrb[0].mxu0
        %1042 = vmatprep.mubr.bf16.mxu0 %v785
        %1043 = vmatmul.mubr.bf16.gmra.mrb[0].mxu0 %v784
        %v1044 = vpop.f32.mrb[0].mxu0
        %v1045 = vadd.f32 0.0, %v1044
        %v1046 = vpop.f32.mrb[0].mxu0
        %v1047 = vpop.f32.mrb[0].mxu0
        %v1048 = vadd.f32 0.0, %v1047
        %v1049 = vpop.f32.mrb[0].mxu0
        %1050 = vmatprep.mubr.bf16.mxu0 %v787
        %1051 = vmatmul.mubr.bf16.gmra.mrb[0].mxu0 %v786
        %v1052 = vpop.f32.mrb[0].mxu0
        %v1053 = vadd.f32 0.0, %v1052
        %v1054 = vpop.f32.mrb[0].mxu0
        %v1055 = vpop.f32.mrb[0].mxu0
        %v1056 = vadd.f32 0.0, %v1055
        %v1057 = vpop.f32.mrb[0].mxu0
        %1058 = vmatprep.mubr.bf16.mxu0 %v789
        %1059 = vmatmul.mubr.bf16.gmra.mrb[0].mxu0 %v788
        %v1060 = vpop.f32.mrb[0].mxu0
        %v1061 = vadd.f32 0.0, %v1060
        %v1062 = vpop.f32.mrb[0].mxu0
        %v1063 = vpop.f32.mrb[0].mxu0
        %v1064 = vadd.f32 0.0, %v1063
        %v1065 = vpop.f32.mrb[0].mxu0
        %1066 = vmatprep.mubr.bf16.mxu0 %v791
        %1067 = vmatmul.mubr.bf16.gmra.mrb[0].mxu0 %v790
        %v1068 = vpop.f32.mrb[0].mxu0
        %v1069 = vadd.f32 0.0, %v1068
        %v1070 = vpop.f32.mrb[0].mxu0
        %v1071 = vpop.f32.mrb[0].mxu0
        %v1072 = vadd.f32 0.0, %v1071
        %v1073 = vpop.f32.mrb[0].mxu0
        %1074 = vmatprep.mubr.bf16.mxu0 %v793
        %1075 = vmatmul.mubr.bf16.gmra.mrb[0].mxu0 %v792
        %v1076 = vpop.f32.mrb[0].mxu0
        %v1077 = vadd.f32 0.0, %v1076
        %v1078 = vpop.f32.mrb[0].mxu0
        %v1079 = vpop.f32.mrb[0].mxu0
        %v1080 = vadd.f32 0.0, %v1079
        %v1081 = vpop.f32.mrb[0].mxu0
        %1082 = vdwg.mxu0
        %v1083 = vpack.c.bf16 %v960, %v957
        %v1084 = vpack.c.bf16 %v968, %v965
        %v1085 = vpack.c.bf16 %v976, %v973
        %v1086 = vpack.c.bf16 %v984, %v981
        %v1087 = vpack.c.bf16 %v992, %v989
        %v1088 = vpack.c.bf16 %v1000, %v997
        %v1089 = vpack.c.bf16 %v1008, %v1005
        %v1090 = vpack.c.bf16 %v1016, %v1013
        %v1091 = vpack.c.bf16 %v1024, %v1021
        %v1092 = vpack.c.bf16 %v1032, %v1029
        %v1093 = vpack.c.bf16 %v1040, %v1037
        %v1094 = vpack.c.bf16 %v1048, %v1045
        %v1095 = vpack.c.bf16 %v1056, %v1053
        %v1096 = vpack.c.bf16 %v1064, %v1061
        %v1097 = vpack.c.bf16 %v1072, %v1069
        %v1098 = vpack.c.bf16 %v1080, %v1077
        %v1099 = vld [vmem:[%s4] sm:$0x1]
        %v1100 = vpack.c.bf16 %v1099, %v1099
        %v1102 = vpack.i.b16 %v1100, %v1100
        %v1104 = vlaneseq
        %v1105 = vshrl.u32 %v1104, 7
        %v1106 = vsub.s32 0, %v1105
        %v1107 = vrot.slane %v1102, %v1106
        %v1108 = vadd.bf16 %v1083, %v1107
        %v1109 = vadd.bf16 %v1084, %v1107
        %v1110 = vadd.bf16 %v1085, %v1107
        %v1111 = vadd.bf16 %v1086, %v1107
        %v1112 = vadd.bf16 %v1087, %v1107
        %v1113 = vadd.bf16 %v1088, %v1107
        %v1114 = vadd.bf16 %v1089, %v1107
        %v1115 = vadd.bf16 %v1090, %v1107
        %v1116 = vadd.bf16 %v1091, %v1107
        %v1117 = vadd.bf16 %v1092, %v1107
        %v1118 = vadd.bf16 %v1093, %v1107
        %v1119 = vadd.bf16 %v1094, %v1107
        %v1120 = vadd.bf16 %v1095, %v1107
        %v1121 = vadd.bf16 %v1096, %v1107
        %v1122 = vadd.bf16 %v1097, %v1107
        %v1123 = vadd.bf16 %v1098, %v1107
        %v1124 = vmax.bf16 %v1108, 0
        %v1125 = vmax.bf16 %v1109, 0
        %v1126 = vmax.bf16 %v1110, 0
        %v1127 = vmax.bf16 %v1111, 0
        %v1128 = vmax.bf16 %v1112, 0
        %v1129 = vmax.bf16 %v1113, 0
        %v1130 = vmax.bf16 %v1114, 0
        %v1131 = vmax.bf16 %v1115, 0
        %v1132 = vmax.bf16 %v1116, 0
        %v1133 = vmax.bf16 %v1117, 0
        %v1134 = vmax.bf16 %v1118, 0
        %v1135 = vmax.bf16 %v1119, 0
        %v1136 = vmax.bf16 %v1120, 0
        %v1137 = vmax.bf16 %v1121, 0
        %v1138 = vmax.bf16 %v1122, 0
        %v1139 = vmax.bf16 %v1123, 0
        %v1140 = vld [vmem:[%s5] sm:$0xf]
        %v1141 = vld [vmem:[%s5 + $0x4] sm:$0xf]
        %v1142 = vld [vmem:[%s5 + $0x8] sm:$0xf]
        %v1143 = vld [vmem:[%s5 + $0xc] sm:$0xf]
        %v1144 = vld [vmem:[%s5 + $0x10] sm:$0xf]
        %v1145 = vld [vmem:[%s5 + $0x14] sm:$0xf]
        %v1146 = vld [vmem:[%s5 + $0x18] sm:$0xf]
        %v1147 = vld [vmem:[%s5 + $0x1c] sm:$0xf]
        %v1148 = vld [vmem:[%s5 + $0x20] sm:$0xf]
        %v1149 = vld [vmem:[%s5 + $0x24] sm:$0xf]
        %v1150 = vld [vmem:[%s5 + $0x28] sm:$0xf]
        %v1151 = vld [vmem:[%s5 + $0x2c] sm:$0xf]
        %v1152 = vld [vmem:[%s5 + $0x30] sm:$0xf]
        %v1153 = vld [vmem:[%s5 + $0x34] sm:$0xf]
        %v1154 = vld [vmem:[%s5 + $0x38] sm:$0xf]
        %v1155 = vld [vmem:[%s5 + $0x3c] sm:$0xf]
        %v1172 = vunpack.c.l.b16 %v1140
        %v1173 = vunpack.c.l.b16 %v1141
        %v1174 = vunpack.c.l.b16 %v1142
        %v1175 = vunpack.c.l.b16 %v1143
        %v1176 = vunpack.c.l.b16 %v1144
        %v1177 = vunpack.c.l.b16 %v1145
        %v1178 = vunpack.c.l.b16 %v1146
        %v1179 = vunpack.c.l.b16 %v1147
        %v1180 = vunpack.c.l.b16 %v1148
        %v1181 = vunpack.c.l.b16 %v1149
        %v1182 = vunpack.c.l.b16 %v1150
        %v1183 = vunpack.c.l.b16 %v1151
        %v1184 = vunpack.c.l.b16 %v1152
        %v1185 = vunpack.c.l.b16 %v1153
        %v1186 = vunpack.c.l.b16 %v1154
        %v1187 = vunpack.c.l.b16 %v1155
        %v1188 = vpack.c.b16 %v1173, %v1172
        %v1189 = vpack.c.b16 %v1175, %v1174
        %v1190 = vpack.c.b16 %v1177, %v1176
        %v1191 = vpack.c.b16 %v1179, %v1178
        %v1192 = vpack.c.b16 %v1181, %v1180
        %v1193 = vpack.c.b16 %v1183, %v1182
        %v1194 = vpack.c.b16 %v1185, %v1184
        %v1195 = vpack.c.b16 %v1187, %v1186
        %1204 = vmatprep.subr.bf16.mxu0 0
        %1205 = vmatpush1.bf16.msra.mxu0 %v1188
        %1206 = vmatprep.subr.bf16.mxu0 0
        %1207 = vmatpush1.bf16.msra.mxu0 %v1189
        %1208 = vmatprep.subr.bf16.mxu0 0
        %1209 = vmatpush1.bf16.msra.mxu0 %v1190
        %1210 = vmatprep.subr.bf16.mxu0 0
        %1211 = vmatpush1.bf16.msra.mxu0 %v1191
        %1212 = vmatprep.subr.bf16.mxu0 0
        %1213 = vmatpush1.bf16.msra.mxu0 %v1192
        %1214 = vmatprep.subr.bf16.mxu0 0
        %1215 = vmatpush1.bf16.msra.mxu0 %v1193
        %1216 = vmatprep.subr.bf16.mxu0 0
        %1217 = vmatpush1.bf16.msra.mxu0 %v1194
        %1218 = vmatprep.subr.bf16.mxu0 0
        %1219 = vmatpush1.bf16.msra.mxu0 %v1195
        %1220 = vmatprep.subr.bf16.mxu0 0
        %1221 = vmatpush1.bf16.msra.mxu0 0
        %1222 = vmatprep.subr.bf16.mxu0 0
        %1223 = vmatpush1.bf16.msra.mxu0 0
        %1224 = vmatprep.subr.bf16.mxu0 0
        %1225 = vmatpush1.bf16.msra.mxu0 0
        %1226 = vmatprep.subr.bf16.mxu0 0
        %1227 = vmatpush1.bf16.msra.mxu0 0
        %1228 = vmatprep.subr.bf16.mxu0 0
        %1229 = vmatpush1.bf16.msra.mxu0 0
        %1230 = vmatprep.subr.bf16.mxu0 0
        %1231 = vmatpush1.bf16.msra.mxu0 0
        %1232 = vmatprep.subr.bf16.mxu0 0
        %1233 = vmatpush1.bf16.msra.mxu0 0
        %1234 = vmatprep.subr.bf16.mxu0 0
        %1235 = vmatpush1.bf16.msra.mxu0 0
        %1236 = vmatprep.mubr.bf16.mxu0 0
        %1237 = vmatmul.mubr.bf16.gmra.mrb[0].mxu0 %v1124
        %v1238 = vpop.f32.mrb[0].mxu0
        %v1239 = vadd.f32 0.0, %v1238
        %v1240 = vpop.f32.mrb[0].mxu0
        %v1241 = vpop.f32.mrb[0].mxu0
        %v1242 = vadd.f32 0.0, %v1241
        %v1243 = vpop.f32.mrb[0].mxu0
        %1244 = vmatprep.mubr.bf16.mxu0 0
        %1245 = vmatmul.mubr.bf16.gmra.mrb[0].mxu0 %v1125
        %v1246 = vpop.f32.mrb[0].mxu0
        %v1247 = vadd.f32 0.0, %v1246
        %v1248 = vpop.f32.mrb[0].mxu0
        %v1249 = vpop.f32.mrb[0].mxu0
        %v1250 = vadd.f32 0.0, %v1249
        %v1251 = vpop.f32.mrb[0].mxu0
        %1252 = vmatprep.mubr.bf16.mxu0 0
        %1253 = vmatmul.mubr.bf16.gmra.mrb[0].mxu0 %v1126
        %v1254 = vpop.f32.mrb[0].mxu0
        %v1255 = vadd.f32 0.0, %v1254
        %v1256 = vpop.f32.mrb[0].mxu0
        %v1257 = vpop.f32.mrb[0].mxu0
        %v1258 = vadd.f32 0.0, %v1257
        %v1259 = vpop.f32.mrb[0].mxu0
        %1260 = vmatprep.mubr.bf16.mxu0 0
        %1261 = vmatmul.mubr.bf16.gmra.mrb[0].mxu0 %v1127
        %v1262 = vpop.f32.mrb[0].mxu0
        %v1263 = vadd.f32 0.0, %v1262
        %v1264 = vpop.f32.mrb[0].mxu0
        %v1265 = vpop.f32.mrb[0].mxu0
        %v1266 = vadd.f32 0.0, %v1265
        %v1267 = vpop.f32.mrb[0].mxu0
        %1268 = vmatprep.mubr.bf16.mxu0 0
        %1269 = vmatmul.mubr.bf16.gmra.mrb[0].mxu0 %v1128
        %v1270 = vpop.f32.mrb[0].mxu0
        %v1271 = vadd.f32 0.0, %v1270
        %v1272 = vpop.f32.mrb[0].mxu0
        %v1273 = vpop.f32.mrb[0].mxu0
        %v1274 = vadd.f32 0.0, %v1273
        %v1275 = vpop.f32.mrb[0].mxu0
        %1276 = vmatprep.mubr.bf16.mxu0 0
        %1277 = vmatmul.mubr.bf16.gmra.mrb[0].mxu0 %v1129
        %v1278 = vpop.f32.mrb[0].mxu0
        %v1279 = vadd.f32 0.0, %v1278
        %v1280 = vpop.f32.mrb[0].mxu0
        %v1281 = vpop.f32.mrb[0].mxu0
        %v1282 = vadd.f32 0.0, %v1281
        %v1283 = vpop.f32.mrb[0].mxu0
        %1284 = vmatprep.mubr.bf16.mxu0 0
        %1285 = vmatmul.mubr.bf16.gmra.mrb[0].mxu0 %v1130
        %v1286 = vpop.f32.mrb[0].mxu0
        %v1287 = vadd.f32 0.0, %v1286
        %v1288 = vpop.f32.mrb[0].mxu0
        %v1289 = vpop.f32.mrb[0].mxu0
        %v1290 = vadd.f32 0.0, %v1289
        %v1291 = vpop.f32.mrb[0].mxu0
        %1292 = vmatprep.mubr.bf16.mxu0 0
        %1293 = vmatmul.mubr.bf16.gmra.mrb[0].mxu0 %v1131
        %v1294 = vpop.f32.mrb[0].mxu0
        %v1295 = vadd.f32 0.0, %v1294
        %v1296 = vpop.f32.mrb[0].mxu0
        %v1297 = vpop.f32.mrb[0].mxu0
        %v1298 = vadd.f32 0.0, %v1297
        %v1299 = vpop.f32.mrb[0].mxu0
        %1300 = vmatprep.mubr.bf16.mxu0 0
        %1301 = vmatmul.mubr.bf16.gmra.mrb[0].mxu0 %v1132
        %v1302 = vpop.f32.mrb[0].mxu0
        %v1303 = vadd.f32 0.0, %v1302
        %v1304 = vpop.f32.mrb[0].mxu0
        %v1305 = vpop.f32.mrb[0].mxu0
        %v1306 = vadd.f32 0.0, %v1305
        %v1307 = vpop.f32.mrb[0].mxu0
        %1308 = vmatprep.mubr.bf16.mxu0 0
        %1309 = vmatmul.mubr.bf16.gmra.mrb[0].mxu0 %v1133
        %v1310 = vpop.f32.mrb[0].mxu0
        %v1311 = vadd.f32 0.0, %v1310
        %v1312 = vpop.f32.mrb[0].mxu0
        %v1313 = vpop.f32.mrb[0].mxu0
        %v1314 = vadd.f32 0.0, %v1313
        %v1315 = vpop.f32.mrb[0].mxu0
        %1316 = vmatprep.mubr.bf16.mxu0 0
        %1317 = vmatmul.mubr.bf16.gmra.mrb[0].mxu0 %v1134
        %v1318 = vpop.f32.mrb[0].mxu0
        %v1319 = vadd.f32 0.0, %v1318
        %v1320 = vpop.f32.mrb[0].mxu0
        %v1321 = vpop.f32.mrb[0].mxu0
        %v1322 = vadd.f32 0.0, %v1321
        %v1323 = vpop.f32.mrb[0].mxu0
        %1324 = vmatprep.mubr.bf16.mxu0 0
        %1325 = vmatmul.mubr.bf16.gmra.mrb[0].mxu0 %v1135
        %v1326 = vpop.f32.mrb[0].mxu0
        %v1327 = vadd.f32 0.0, %v1326
        %v1328 = vpop.f32.mrb[0].mxu0
        %v1329 = vpop.f32.mrb[0].mxu0
        %v1330 = vadd.f32 0.0, %v1329
        %v1331 = vpop.f32.mrb[0].mxu0
        %1332 = vmatprep.mubr.bf16.mxu0 0
        %1333 = vmatmul.mubr.bf16.gmra.mrb[0].mxu0 %v1136
        %v1334 = vpop.f32.mrb[0].mxu0
        %v1335 = vadd.f32 0.0, %v1334
        %v1336 = vpop.f32.mrb[0].mxu0
        %v1337 = vpop.f32.mrb[0].mxu0
        %v1338 = vadd.f32 0.0, %v1337
        %v1339 = vpop.f32.mrb[0].mxu0
        %1340 = vmatprep.mubr.bf16.mxu0 0
        %1341 = vmatmul.mubr.bf16.gmra.mrb[0].mxu0 %v1137
        %v1342 = vpop.f32.mrb[0].mxu0
        %v1343 = vadd.f32 0.0, %v1342
        %v1344 = vpop.f32.mrb[0].mxu0
        %v1345 = vpop.f32.mrb[0].mxu0
        %v1346 = vadd.f32 0.0, %v1345
        %v1347 = vpop.f32.mrb[0].mxu0
        %1348 = vmatprep.mubr.bf16.mxu0 0
        %1349 = vmatmul.mubr.bf16.gmra.mrb[0].mxu0 %v1138
        %v1350 = vpop.f32.mrb[0].mxu0
        %v1351 = vadd.f32 0.0, %v1350
        %v1352 = vpop.f32.mrb[0].mxu0
        %v1353 = vpop.f32.mrb[0].mxu0
        %v1354 = vadd.f32 0.0, %v1353
        %v1355 = vpop.f32.mrb[0].mxu0
        %1356 = vmatprep.mubr.bf16.mxu0 0
        %1357 = vmatmul.mubr.bf16.gmra.mrb[0].mxu0 %v1139
        %v1358 = vpop.f32.mrb[0].mxu0
        %v1359 = vadd.f32 0.0, %v1358
        %v1360 = vpop.f32.mrb[0].mxu0
        %v1361 = vpop.f32.mrb[0].mxu0
        %v1362 = vadd.f32 0.0, %v1361
        %v1363 = vpop.f32.mrb[0].mxu0
        %1364 = vdwg.mxu0
        %v1365 = vpack.c.bf16 %v1242, %v1239
        %v1366 = vpack.c.bf16 %v1250, %v1247
        %v1367 = vpack.c.bf16 %v1258, %v1255
        %v1368 = vpack.c.bf16 %v1266, %v1263
        %v1369 = vpack.c.bf16 %v1274, %v1271
        %v1370 = vpack.c.bf16 %v1282, %v1279
        %v1371 = vpack.c.bf16 %v1290, %v1287
        %v1372 = vpack.c.bf16 %v1298, %v1295
        %v1373 = vpack.c.bf16 %v1306, %v1303
        %v1374 = vpack.c.bf16 %v1314, %v1311
        %v1375 = vpack.c.bf16 %v1322, %v1319
        %v1376 = vpack.c.bf16 %v1330, %v1327
        %v1377 = vpack.c.bf16 %v1338, %v1335
        %v1378 = vpack.c.bf16 %v1346, %v1343
        %v1379 = vpack.c.bf16 %v1354, %v1351
        %v1380 = vpack.c.bf16 %v1362, %v1359
        %v1381 = vld [vmem:[%s6] sm:$0x1]
        %v1382 = vpack.c.bf16 %v1381, %v1381
        %v1384 = vpack.i.b16 %v1382, %v1382
        %v1386 = vlaneseq
        %v1387 = vshrl.u32 %v1386, 7
        %v1388 = vsub.s32 0, %v1387
        %v1389 = vrot.slane %v1384, %v1388
        %v1390 = vadd.bf16 %v1365, %v1389
        %v1391 = vadd.bf16 %v1366, %v1389
        %v1392 = vadd.bf16 %v1367, %v1389
        %v1393 = vadd.bf16 %v1368, %v1389
        %v1394 = vadd.bf16 %v1369, %v1389
        %v1395 = vadd.bf16 %v1370, %v1389
        %v1396 = vadd.bf16 %v1371, %v1389
        %v1397 = vadd.bf16 %v1372, %v1389
        %v1398 = vadd.bf16 %v1373, %v1389
        %v1399 = vadd.bf16 %v1374, %v1389
        %v1400 = vadd.bf16 %v1375, %v1389
        %v1401 = vadd.bf16 %v1376, %v1389
        %v1402 = vadd.bf16 %v1377, %v1389
        %v1403 = vadd.bf16 %v1378, %v1389
        %v1404 = vadd.bf16 %v1379, %v1389
        %v1405 = vadd.bf16 %v1380, %v1389
        %v1406 = vmax.bf16 %v1390, 0
        %v1407 = vmax.bf16 %v1391, 0
        %v1408 = vmax.bf16 %v1392, 0
        %v1409 = vmax.bf16 %v1393, 0
        %v1410 = vmax.bf16 %v1394, 0
        %v1411 = vmax.bf16 %v1395, 0
        %v1412 = vmax.bf16 %v1396, 0
        %v1413 = vmax.bf16 %v1397, 0
        %v1414 = vmax.bf16 %v1398, 0
        %v1415 = vmax.bf16 %v1399, 0
        %v1416 = vmax.bf16 %v1400, 0
        %v1417 = vmax.bf16 %v1401, 0
        %v1418 = vmax.bf16 %v1402, 0
        %v1419 = vmax.bf16 %v1403, 0
        %v1420 = vmax.bf16 %v1404, 0
        %v1421 = vmax.bf16 %v1405, 0
        %v1422 = vld [vmem:[%s7] sm:$0xf]
        %vm1423 = vcmask 523264
        %v1425 = vsel %vm1423, %v1422, 0
        %v1428 = vsel %vm1423, %v1406, 0
        %v1431 = vsel %vm1423, %v1407, 0
        %v1434 = vsel %vm1423, %v1408, 0
        %v1437 = vsel %vm1423, %v1409, 0
        %v1440 = vsel %vm1423, %v1410, 0
        %v1443 = vsel %vm1423, %v1411, 0
        %v1446 = vsel %vm1423, %v1412, 0
        %v1449 = vsel %vm1423, %v1413, 0
        %v1452 = vsel %vm1423, %v1414, 0
        %v1455 = vsel %vm1423, %v1415, 0
        %v1458 = vsel %vm1423, %v1416, 0
        %v1461 = vsel %vm1423, %v1417, 0
        %v1464 = vsel %vm1423, %v1418, 0
        %v1467 = vsel %vm1423, %v1419, 0
        %v1470 = vsel %vm1423, %v1420, 0
        %v1473 = vsel %vm1423, %v1421, 0
        %1475 = vmatprep.subr.bf16.mxu0 0
        %1476 = vmatpush1.bf16.xpose.msra.mxu0 %v1428
        %1477 = vmatprep.subr.bf16.mxu0 0
        %1478 = vmatpush1.bf16.xpose.msra.mxu0 %v1431
        %1479 = vmatprep.subr.bf16.mxu0 0
        %1480 = vmatpush1.bf16.xpose.msra.mxu0 %v1434
        %1481 = vmatprep.subr.bf16.mxu0 0
        %1482 = vmatpush1.bf16.xpose.msra.mxu0 %v1437
        %1483 = vmatprep.subr.bf16.mxu0 0
        %1484 = vmatpush1.bf16.xpose.msra.mxu0 %v1440
        %1485 = vmatprep.subr.bf16.mxu0 0
        %1486 = vmatpush1.bf16.xpose.msra.mxu0 %v1443
        %1487 = vmatprep.subr.bf16.mxu0 0
        %1488 = vmatpush1.bf16.xpose.msra.mxu0 %v1446
        %1489 = vmatprep.subr.bf16.mxu0 0
        %1490 = vmatpush1.bf16.xpose.msra.mxu0 %v1449
        %1491 = vmatprep.subr.bf16.mxu0 0
        %1492 = vmatpush1.bf16.xpose.msra.mxu0 %v1452
        %1493 = vmatprep.subr.bf16.mxu0 0
        %1494 = vmatpush1.bf16.xpose.msra.mxu0 %v1455
        %1495 = vmatprep.subr.bf16.mxu0 0
        %1496 = vmatpush1.bf16.xpose.msra.mxu0 %v1458
        %1497 = vmatprep.subr.bf16.mxu0 0
        %1498 = vmatpush1.bf16.xpose.msra.mxu0 %v1461
        %1499 = vmatprep.subr.bf16.mxu0 0
        %1500 = vmatpush1.bf16.xpose.msra.mxu0 %v1464
        %1501 = vmatprep.subr.bf16.mxu0 0
        %1502 = vmatpush1.bf16.xpose.msra.mxu0 %v1467
        %1503 = vmatprep.subr.bf16.mxu0 0
        %1504 = vmatpush1.bf16.xpose.msra.mxu0 %v1470
        %1505 = vmatprep.subr.bf16.mxu0 0
        %1506 = vmatpush1.bf16.xpose.msra.mxu0 %v1473
        %1507 = vmatprep.mubr.bf16.mxu0 0
        %1508 = vmatmul.mubr.bf16.gmra.mrb[0].mxu0 %v1425
        %v1509 = vpop.f32.mrb[0].mxu0
        %v1510 = vadd.f32 0.0, %v1509
        %v1511 = vpop.f32.mrb[0].mxu0
        %v1512 = vadd.f32 0.0, %v1511
        %v1513 = vpop.f32.mrb[0].mxu0
        %v1514 = vpop.f32.mrb[0].mxu0
        %1515 = vdwg.mxu0
        %s1516 = sld [smem:[#allocation2]]
        %v1517 = vstv %s1516
        %v1518 = vadd.f32 %v1510, %v1517
        %v1519 = vadd.f32 %v1512, %v1517
        %v1522 = vcombine.low %v1518, %v1519
        %v1524 = vunpack.c.l.s4 1966171168
        %v1525 = vunpack.c.0.s8 %v1524
        %v1526 = vlaneseq
        %v1527 = vshrl.u32 %v1526, 7
        %v1528 = vsub.s32 %v1525, %v1527
        %v1529 = vrot.slane %v1522, %v1528
        %v1531 = vunpack.c.l.s4 1966171168
        %v1532 = vunpack.c.0.s8 %v1531
        %v1533 = vlaneseq
        %v1534 = vshrl.u32 %v1533, 7
        %v1535 = vsub.s32 %v1532, %v1534
        %v1536 = vrot.slane %v1529, %v1535
        %v1538 = vlaneseq
        %vm1539 = vcmp.ge.s32.totalorder %v1538, 0
        %vm1540 = vcmp.lt.s32.totalorder %v1538, 256
        %vm1541 = vmand %vm1539, %vm1540
        %1542 = vst.msk [vmem:[%s339] sm:$0x3] %vm1541, %v1536
        %s1543 = sand.u32 %s226, 1
        %s1544 = scalar_lea.sflag [#allocation4], %s1543
        %s1545 = sand.u32 %s226, 1
        %s1546 = smul.addr %s1545, 2
        %s1547 = scalar_lea.vmem [#allocation3], %s1546
        // Predicated region
        $region57: #{tpu_custom_call.1} parent=55 // pred_check
          %p1548 = pneg %p236
        $region58: #{tpu_custom_call.1} parent=55 // pred_check_branch
          %1550 = sbr.rel (%p1548) target = $region60
        $region59: #{tpu_custom_call.1} parent=55 // pred_region
          %s1551 = smul.u32 2, %s24
          %s1553 = ssub.s32 32, 32
          %1554 = vsyncadd %s1544, %s1553
          %s1555 = smul.addr %s1551, 16
          %s1556 = scalar_lea.hbm %s9, %s1555
          %s1558 = sshll.u32 %s1547, 4
          %s1559 = int_to_ptr.vmem [resolvable:$true] %s1558
          %1561 = dma.vmem_to_hbm [thread:$0]  %s1559, 32, %s1556, %s1544
        $region60: #{tpu_custom_call.1} parent=55 // pred_fallthru
          _
      $region56: #{tpu_custom_call.1} parent=5 // pred_fallthru
        _
      %p1562 = scmp.le.s32.totalorder 2, %s19
      // Predicated region
      $region61: #{tpu_custom_call.1} parent=5 // pred_check
        %p1563 = pneg %p1562
      $region62: #{tpu_custom_call.1} parent=5 // pred_check_branch
        %1565 = sbr.rel (%p1563) target = $region64
      $region63: #{tpu_custom_call.1} parent=5 // pred_region
        %s1566 = ssub.s32 %s19, 2
        // Predicated region
        $region65: #{tpu_custom_call.1} parent=63 // pred_check
          %p1567 = pneg %p242
        $region66: #{tpu_custom_call.1} parent=63 // pred_check_branch
          %1569 = sbr.rel (%p1567) target = $region68
        $region67: #{tpu_custom_call.1} parent=63 // pred_region
          %s1570 = sand.u32 %s227, 1
          %s1571 = scalar_lea.sflag [#allocation4], %s1570
          %s1572 = sand.u32 %s227, 1
          %s1573 = smul.addr %s1572, 2
          %s1574 = scalar_lea.vmem [#allocation3], %s1573
          %1575 = dma.done %s1571, 32
        $region68: #{tpu_custom_call.1} parent=63 // pred_fallthru
          _
      $region64: #{tpu_custom_call.1} parent=5 // pred_fallthru
        _
    $region6: #{tpu_custom_call.1} parent=1 // loop_footer
      %s23 = sadd.s32 1, %s19
    $region7: #{tpu_custom_call.1} parent=1 // loop_footer_branch
      %18 = sbr.rel target = $region3
    $region8: #{tpu_custom_call.1} parent=1 // loop_exit
      _
    %1576 = vsyncpa [#allocation4], 1
    %s1577 = scalar_lea.sflag [#allocation4], 1
    %1578 = vsyncpa %s1577, 1

</llo_original>
